<compile_context>
chip_gen: v5e
topology: v5e:2x2
jax: 0.10.0
libtpu: 0.0.40
codegen_flags: <defaults>
</compile_context>

<pallas_src>
import jax
import jax.numpy as jnp
from jax import lax
from jax.experimental import pallas as pl
from jax.experimental.pallas import tpu as pltpu


def _round_up(n, m):
    return ((n + m - 1) // m) * m


def _mxu_dtype():
    # bf16 MXU operands on TPU; f32 elsewhere (CPU dot executor rejects
    # BF16 x BF16 = F32, which is what broke the previous run in interpret mode).
    return jnp.bfloat16 if jax.default_backend() == "tpu" else jnp.float32


def _make_gru_kernel(t_valid, tt, needs_mask, unroll):
    """Builds the recurrence kernel for a fixed (static) chunk length tt."""

    def kernel(gi_ref, whh_ref, bhn_ref, out_ref):
        """One grid step == one chunk of tt time steps of the GRU recurrence.

        gi_ref : (tt, TB, 3Hp) precomputed x@W_ih^T + b_ih (+ b_hh_{r,z} folded in),
                 f32, gate-blocked [r|z|n], each gate padded to Hp lanes.
        whh_ref: (Hp, 3Hp) hidden->hidden weights (transposed, gate-blocked).
        bhn_ref: (1, Hp)   b_hh_n only (it is scaled by r, cannot be folded).
        out_ref: (TB, Hp)  hidden state; VMEM-resident across the time axis and used
                           directly as the recurrence carry (f32).
        """
        c = pl.program_id(1)                       # time-chunk index (sequential)

        @pl.when(c == 0)
        def _():
            out_ref[...] = jnp.zeros_like(out_ref)

        tb, hp = out_ref.shape
        whh = whh_ref[...]                                     # (Hp, 3Hp)
        bhn = jnp.broadcast_to(bhn_ref[...], (tb, hp))         # hoisted broadcast
        h0 = out_ref[...]                                      # (TB, Hp) f32 carry
        t0 = c * tt

        def step(t, h):
            gi = gi_ref[t]                                     # (TB, 3Hp) f32
            # Only the hidden->hidden matmul remains in the serial loop
            # (bf16 MXU operands on TPU, f32 accumulation; gate math stays f32).
            gh = jnp.dot(h.astype(whh.dtype), whh,
                         preferred_element_type=jnp.float32)
            i_r, i_z, i_n = gi[:, :hp], gi[:, hp:2 * hp], gi[:, 2 * hp:]
            h_r, h_z, h_n = gh[:, :hp], gh[:, hp:2 * hp], gh[:, 2 * hp:]
            r = jax.nn.sigmoid(i_r + h_r)          # b_ih_r + b_hh_r already in i_r
            z = jax.nn.sigmoid(i_z + h_z)          # b_ih_z + b_hh_z already in i_z
            n = jnp.tanh(i_n + r * (h_n + bhn))    # b_hh_n scaled by r -> in-kernel
            h_new = (1.0 - z) * n + z * h
            if needs_mask:
                # Padded tail steps (t0 + t >= T) carry h through unchanged.
                h_new = jnp.where(t0 + t < t_valid, h_new, h)
            return h_new

        out_ref[...] = lax.fori_loop(0, tt, step, h0, unroll=unroll)

    return kernel


def gru_encoder_pallas(x_btd, w_ih, w_hh, b_ih, b_hh, *, time_chunk=32):
    """x_btd: (B, T, D) batch-first input.  Weights in PyTorch nn.GRU layout:
    w_ih (3H, D), w_hh (3H, H), b_ih (3H,), b_hh (3H,).  Returns (B, H) f32."""
    B, T, D = x_btd.shape
    H = w_ih.shape[0] // 3

    f32 = jnp.float32
    mxu = _mxu_dtype()
    mxu_bytes = jnp.dtype(mxu).itemsize

    # ---- layout plumbing (weights only; no big activation copies) ---------------
    Hp = _round_up(H, 128)          # lane-aligned gate width
    Gp = 3 * Hp
    # TODO(synk): for production H << 128, per-gate padding to Hp=128 inflates the
    # W_hh matmul ~16x at H=32; pack 3H contiguously / batch small GRUs instead.

    # Batch tiling: whole padded batch in one block up to 256 rows (feeds the MXU
    # with many LHS rows per step); split into ceil(Bp/256) blocks beyond that.
    # On v7x one may prefer exactly 2 blocks (one per TensorCore) for large B.
    Bp0 = _round_up(B, 8)
    NB = max(1, -(-Bp0 // 256))
    TB = _round_up(-(-Bp0 // NB), 8)
    Bp = NB * TB

    # Time chunking with padding + in-kernel masking (no divisor search).
    TT = max(1, min(time_chunk, T))

    def vmem_est(tt, tb):
        return (2 * tt * tb * Gp * 4          # double-buffered gi chunk (f32)
                + 2 * Hp * Gp * mxu_bytes     # double-buffered W_hh (constant)
                + 2 * Hp * 4                  # double-buffered b_hh_n
                + tb * Hp * 4)                # resident h carry block

    # Keep under ~48 MiB so it also fits v7x's 64 MiB physical VMEM.
    while vmem_est(TT, TB) > 48 * 2**20 and TT > 8:
        TT = max(8, TT // 2)

    Tp = _round_up(T, TT)
    NC = Tp // TT
    needs_mask = (Tp != T)
    unroll = max(1, min(8, TT))               # cap unroll to limit vreg pressure

    def gate_block_weight(w):       # (3H, K) -> (K, 3Hp), cols = [r | z | n] padded
        k = w.shape[1]
        w_g = jnp.transpose(w.reshape(3, H, k), (2, 0, 1))        # (K, 3, H)
        w_g = jnp.pad(w_g, ((0, 0), (0, 0), (0, Hp - H)))
        return w_g.reshape(k, Gp)

    wih_p = gate_block_weight(w_ih).astype(mxu)                   # (D, 3Hp)
    whh_p = gate_block_weight(w_hh)                               # (H, 3Hp)
    whh_p = jnp.pad(whh_p, ((0, Hp - H), (0, 0))).astype(mxu)     # (Hp, 3Hp)

    # Fold b_hh_r / b_hh_z into the hoisted projection bias; keep b_hh_n separate.
    b_ih3 = b_ih.reshape(3, H).astype(f32)
    b_hh3 = b_hh.reshape(3, H).astype(f32)
    b_gi3 = jnp.concatenate([b_ih3[:2] + b_hh3[:2], b_ih3[2:3]], axis=0)   # (3, H)
    bih_fused = jnp.pad(b_gi3, ((0, 0), (0, Hp - H))).reshape(1, Gp)       # (1, 3Hp)
    bhn_p = jnp.pad(b_hh3[2:3], ((0, 0), (0, Hp - H)))                     # (1, Hp)

    # ---- hoisted input projection: one big (Tp*Bp, D) x (D, 3Hp) matmul ----------
    # x is transposed to time-major (cheap: D << 3Hp, mxu dtype) so gi comes out of
    # the matmul directly in the (Tp, Bp, 3Hp) layout the kernel streams -- no
    # extra HBM round-trip of the large f32 gi tensor.
    x_p = jnp.pad(x_btd, ((0, Bp - B), (0, Tp - T), (0, 0)))
    x_tbd = jnp.transpose(x_p, (1, 0, 2)).astype(mxu)             # (Tp, Bp, D)
    gi = jnp.einsum("tbd,dg->tbg", x_tbd, wih_p,
                    preferred_element_type=f32) + bih_fused       # (Tp, Bp, 3Hp) f32

    # ---- grid: (parallel batch blocks, sequential time chunks) -------------------
    kernel = _make_gru_kernel(T, TT, needs_mask, unroll)

    grid_spec = pltpu.PrefetchScalarGridSpec(
        num_scalar_prefetch=0,
        grid=(NB, NC),
        in_specs=[
            pl.BlockSpec((TT, TB, Gp), lambda b, c: (c, b, 0)),   # gi chunk
            pl.BlockSpec((Hp, Gp), lambda b, c: (0, 0)),          # W_hh (constant)
            pl.BlockSpec((1, Hp), lambda b, c: (0, 0)),           # b_hh_n (constant)
        ],
        out_specs=pl.BlockSpec((TB, Hp), lambda b, c: (b, 0)),    # h carry
    )

    vmem_limit = int(min(64 * 2**20, max(32 * 2**20, 2 * vmem_est(TT, TB))))
    out_p = pl.pallas_call(
        kernel,
        out_shape=jax.ShapeDtypeStruct((Bp, Hp), f32),
        grid_spec=grid_spec,
        compiler_params=pltpu.CompilerParams(
            dimension_semantics=("parallel", "arbitrary"),
            vmem_limit_bytes=vmem_limit,
        ),
    )(gi, whh_p, bhn_p)

    return out_p[:B, :H]


def gru_encoder_ref(x_btd, w_ih, w_hh, b_ih, b_hh, matmul_dtype=jnp.float32):
    """Pure-JAX reference (PyTorch nn.GRU semantics, 1 layer, unidirectional).
    matmul_dtype=_mxu_dtype() reproduces the kernel's MXU numerics."""
    B, T, D = x_btd.shape
    H = w_hh.shape[1]
    wih_t = w_ih.T.astype(matmul_dtype)
    whh_t = w_hh.T.astype(matmul_dtype)

    def step(h, x_t):
        gi = jnp.dot(x_t.astype(matmul_dtype), wih_t,
                     preferred_element_type=jnp.float32) + b_ih
        gh = jnp.dot(h.astype(matmul_dtype), whh_t,
                     preferred_element_type=jnp.float32) + b_hh
        i_r, i_z, i_n = gi[:, :H], gi[:, H:2 * H], gi[:, 2 * H:]
        h_r, h_z, h_n = gh[:, :H], gh[:, H:2 * H], gh[:, 2 * H:]
        r = jax.nn.sigmoid(i_r + h_r)
        z = jax.nn.sigmoid(i_z + h_z)
        n = jnp.tanh(i_n + r * h_n)
        return (1.0 - z) * n + z * h, None

    h0 = jnp.zeros((B, H), jnp.float32)
    h_last, _ = lax.scan(step, h0, jnp.transpose(x_btd, (1, 0, 2)))
    return h_last


if __name__ == "__main__":
    # Shapes consistent with the module's forward:
    # inputs: (batch_size, num_tokens, input_size); output: (batch_size, hidden_size)
    B, T, D, H = 2, 8, 16, 32

    key = jax.random.PRNGKey(0)
    k_x, k_wih, k_whh, k_bih, k_bhh = jax.random.split(key, 5)

    # Deterministic init mimicking nn.GRU default: U(-1/sqrt(H), 1/sqrt(H)).
    bound = 1.0 / jnp.sqrt(jnp.float32(H))
    x = jax.random.normal(k_x, (B, T, D), jnp.float32)
    w_ih = jax.random.uniform(k_wih, (3 * H, D), jnp.float32, -bound, bound)
    w_hh = jax.random.uniform(k_whh, (3 * H, H), jnp.float32, -bound, bound)
    b_ih = jax.random.uniform(k_bih, (3 * H,), jnp.float32, -bound, bound)
    b_hh = jax.random.uniform(k_bhh, (3 * H,), jnp.float32, -bound, bound)

    out = gru_encoder_pallas(x, w_ih, w_hh, b_ih, b_hh)
    out = jax.block_until_ready(out)
    assert out.shape == (B, H), out.shape

    # Same-numerics reference (same MXU operand dtype, f32 accumulate) -> tight check.
    ref_tight = gru_encoder_ref(x, w_ih, w_hh, b_ih, b_hh, matmul_dtype=_mxu_dtype())
    assert jnp.allclose(out, ref_tight, atol=2e-3, rtol=2e-3), \
        "mismatch vs. MXU-dtype-matched reference"

    # Full-f32 PyTorch-semantics reference -> loose check (bf16 rounding tolerance).
    ref_f32 = gru_encoder_ref(x, w_ih, w_hh, b_ih, b_hh)
    assert jnp.allclose(out, ref_f32, atol=5e-2, rtol=5e-2), \
        "mismatch vs. f32 reference"

    print("KERNEL_OK")
</pallas_src>

<mosaic_0001>
module attributes {stable_mosaic.version = 11 : i64} {
  func.func @kernel(%arg0: i32, %arg1: i32, %arg2: memref<8x8x384xf32, #tpu.memory_space<vmem>>, %arg3: memref<128x384xf32, #tpu.memory_space<vmem>>, %arg4: memref<1x128xf32, #tpu.memory_space<vmem>>, %arg5: memref<8x128xf32, #tpu.memory_space<vmem>>) attributes {dimension_semantics = [#tpu.dimension_semantics<parallel>, #tpu.dimension_semantics<arbitrary>], iteration_bounds = array<i64: 1, 1>, scalar_prefetch = 0 : i64, scratch_operands = 0 : i64, tpu.core_type = #tpu.core_type<tc>, window_params = [{transform_indices = @transform_0, window_bounds = array<i64: 8, 8, 384>}, {pipeline_mode = #tpu.pipeline_mode<synchronous>, transform_indices = @transform_1, window_bounds = array<i64: 128, 384>}, {pipeline_mode = #tpu.pipeline_mode<synchronous>, transform_indices = @transform_2, window_bounds = array<i64: 1, 128>}, {transform_indices = @transform_3, window_bounds = array<i64: 8, 128>}]} {
    %c0_i32 = arith.constant 0 : i32
    %0 = arith.cmpi eq, %arg1, %c0_i32 : i32
    %1 = arith.extui %0 : i1 to i32
    %c0_i32_0 = arith.constant 0 : i32
    %2 = arith.cmpi ne, %1, %c0_i32_0 : i32
    scf.if %2 {
      %cst_56 = arith.constant 0.000000e+00 : f32
      %257 = vector.broadcast %cst_56 : f32 to vector<8x128xf32>
      %c0_57 = arith.constant 0 : index
      %c0_58 = arith.constant 0 : index
      %258 = vector.load %arg5[%c0_57, %c0_58] : memref<8x128xf32, #tpu.memory_space<vmem>>, vector<8x128xf32>
      tpu.vector_store %arg5[%c0_57, %c0_58], %257 {strides = array<i32>} : memref<8x128xf32, #tpu.memory_space<vmem>>, vector<8x128xf32>,
    } else {
    }
    %c0 = arith.constant 0 : index
    %c0_1 = arith.constant 0 : index
    %3 = vector.load %arg3[%c0, %c0_1] : memref<128x384xf32, #tpu.memory_space<vmem>>, vector<128x384xf32>
    %c0_2 = arith.constant 0 : index
    %c0_3 = arith.constant 0 : index
    %4 = vector.load %arg4[%c0_2, %c0_3] : memref<1x128xf32, #tpu.memory_space<vmem>>, vector<1x128xf32>
    %5 = vector.shape_cast %4 : vector<1x128xf32> to vector<1x128xf32>
    %6 = vector.broadcast %5 : vector<1x128xf32> to vector<8x128xf32>
    %c0_4 = arith.constant 0 : index
    %c0_5 = arith.constant 0 : index
    %7 = vector.load %arg5[%c0_4, %c0_5] : memref<8x128xf32, #tpu.memory_space<vmem>>, vector<8x128xf32>
    %c0_i32_6 = arith.constant 0 : i32
    %8 = arith.index_cast %c0_i32_6 : i32 to index
    %c0_7 = arith.constant 0 : index
    %c0_8 = arith.constant 0 : index
    %9 = vector.load %arg2[%8, %c0_7, %c0_8] : memref<8x8x384xf32, #tpu.memory_space<vmem>>, vector<1x8x384xf32>
    %10 = vector.shape_cast %9 : vector<1x8x384xf32> to vector<8x384xf32>
    %cst = arith.constant dense<0.000000e+00> : vector<8x384xf32>
    %11 = tpu.matmul %7, %3, %cst {dimension_numbers = #tpu.dot_dimension_numbers<[1], [0], [0], [1], [0, 0, 1, 1], [], []>} : vector<8x128xf32>, vector<128x384xf32>, vector<8x384xf32> -> vector<8x384xf32>
    %12 = vector.extract_strided_slice %10 {offsets = [0, 0], sizes = [8, 128], strides = [1, 1]} : vector<8x384xf32> to vector<8x128xf32>
    %13 = vector.extract_strided_slice %10 {offsets = [0, 128], sizes = [8, 128], strides = [1, 1]} : vector<8x384xf32> to vector<8x128xf32>
    %14 = vector.extract_strided_slice %10 {offsets = [0, 256], sizes = [8, 128], strides = [1, 1]} : vector<8x384xf32> to vector<8x128xf32>
    %15 = vector.extract_strided_slice %11 {offsets = [0, 0], sizes = [8, 128], strides = [1, 1]} : vector<8x384xf32> to vector<8x128xf32>
    %16 = vector.extract_strided_slice %11 {offsets = [0, 128], sizes = [8, 128], strides = [1, 1]} : vector<8x384xf32> to vector<8x128xf32>
    %17 = vector.extract_strided_slice %11 {offsets = [0, 256], sizes = [8, 128], strides = [1, 1]} : vector<8x384xf32> to vector<8x128xf32>
    %18 = arith.addf %12, %15 : vector<8x128xf32>
    %19 = arith.negf %18 : vector<8x128xf32>
    %20 = math.exp %19 : vector<8x128xf32>
    %cst_9 = arith.constant 1.000000e+00 : f32
    %21 = vector.broadcast %cst_9 : f32 to vector<8x128xf32>
    %22 = arith.addf %21, %20 : vector<8x128xf32>
    %23 = arith.divf %21, %22 : vector<8x128xf32>
    %24 = arith.addf %13, %16 : vector<8x128xf32>
    %25 = arith.negf %24 : vector<8x128xf32>
    %26 = math.exp %25 : vector<8x128xf32>
    %cst_10 = arith.constant 1.000000e+00 : f32
    %27 = vector.broadcast %cst_10 : f32 to vector<8x128xf32>
    %28 = arith.addf %27, %26 : vector<8x128xf32>
    %29 = arith.divf %27, %28 : vector<8x128xf32>
    %30 = arith.addf %17, %6 : vector<8x128xf32>
    %31 = arith.mulf %23, %30 : vector<8x128xf32>
    %32 = arith.addf %14, %31 : vector<8x128xf32>
    %33 = math.tanh %32 : vector<8x128xf32>
    %cst_11 = arith.constant 1.000000e+00 : f32
    %34 = vector.broadcast %cst_11 : f32 to vector<8x128xf32>
    %35 = arith.subf %34, %29 : vector<8x128xf32>
    %36 = arith.mulf %35, %33 : vector<8x128xf32>
    %37 = arith.mulf %29, %7 : vector<8x128xf32>
    %38 = arith.addf %36, %37 : vector<8x128xf32>
    %c1_i32 = arith.constant 1 : i32
    %39 = arith.index_cast %c1_i32 : i32 to index
    %c0_12 = arith.constant 0 : index
    %c0_13 = arith.constant 0 : index
    %40 = vector.load %arg2[%39, %c0_12, %c0_13] : memref<8x8x384xf32, #tpu.memory_space<vmem>>, vector<1x8x384xf32>
    %41 = vector.shape_cast %40 : vector<1x8x384xf32> to vector<8x384xf32>
    %cst_14 = arith.constant dense<0.000000e+00> : vector<8x384xf32>
    %42 = tpu.matmul %38, %3, %cst_14 {dimension_numbers = #tpu.dot_dimension_numbers<[1], [0], [0], [1], [0, 0, 1, 1], [], []>} : vector<8x128xf32>, vector<128x384xf32>, vector<8x384xf32> -> vector<8x384xf32>
    %43 = vector.extract_strided_slice %41 {offsets = [0, 0], sizes = [8, 128], strides = [1, 1]} : vector<8x384xf32> to vector<8x128xf32>
    %44 = vector.extract_strided_slice %41 {offsets = [0, 128], sizes = [8, 128], strides = [1, 1]} : vector<8x384xf32> to vector<8x128xf32>
    %45 = vector.extract_strided_slice %41 {offsets = [0, 256], sizes = [8, 128], strides = [1, 1]} : vector<8x384xf32> to vector<8x128xf32>
    %46 = vector.extract_strided_slice %42 {offsets = [0, 0], sizes = [8, 128], strides = [1, 1]} : vector<8x384xf32> to vector<8x128xf32>
    %47 = vector.extract_strided_slice %42 {offsets = [0, 128], sizes = [8, 128], strides = [1, 1]} : vector<8x384xf32> to vector<8x128xf32>
    %48 = vector.extract_strided_slice %42 {offsets = [0, 256], sizes = [8, 128], strides = [1, 1]} : vector<8x384xf32> to vector<8x128xf32>
    %49 = arith.addf %43, %46 : vector<8x128xf32>
    %50 = arith.negf %49 : vector<8x128xf32>
    %51 = math.exp %50 : vector<8x128xf32>
    %cst_15 = arith.constant 1.000000e+00 : f32
    %52 = vector.broadcast %cst_15 : f32 to vector<8x128xf32>
    %53 = arith.addf %52, %51 : vector<8x128xf32>
    %54 = arith.divf %52, %53 : vector<8x128xf32>
    %55 = arith.addf %44, %47 : vector<8x128xf32>
    %56 = arith.negf %55 : vector<8x128xf32>
    %57 = math.exp %56 : vector<8x128xf32>
    %cst_16 = arith.constant 1.000000e+00 : f32
    %58 = vector.broadcast %cst_16 : f32 to vector<8x128xf32>
    %59 = arith.addf %58, %57 : vector<8x128xf32>
    %60 = arith.divf %58, %59 : vector<8x128xf32>
    %61 = arith.addf %48, %6 : vector<8x128xf32>
    %62 = arith.mulf %54, %61 : vector<8x128xf32>
    %63 = arith.addf %45, %62 : vector<8x128xf32>
    %64 = math.tanh %63 : vector<8x128xf32>
    %cst_17 = arith.constant 1.000000e+00 : f32
    %65 = vector.broadcast %cst_17 : f32 to vector<8x128xf32>
    %66 = arith.subf %65, %60 : vector<8x128xf32>
    %67 = arith.mulf %66, %64 : vector<8x128xf32>
    %68 = arith.mulf %60, %38 : vector<8x128xf32>
    %69 = arith.addf %67, %68 : vector<8x128xf32>
    %c2_i32 = arith.constant 2 : i32
    %70 = arith.index_cast %c2_i32 : i32 to index
    %c0_18 = arith.constant 0 : index
    %c0_19 = arith.constant 0 : index
    %71 = vector.load %arg2[%70, %c0_18, %c0_19] : memref<8x8x384xf32, #tpu.memory_space<vmem>>, vector<1x8x384xf32>
    %72 = vector.shape_cast %71 : vector<1x8x384xf32> to vector<8x384xf32>
    %cst_20 = arith.constant dense<0.000000e+00> : vector<8x384xf32>
    %73 = tpu.matmul %69, %3, %cst_20 {dimension_numbers = #tpu.dot_dimension_numbers<[1], [0], [0], [1], [0, 0, 1, 1], [], []>} : vector<8x128xf32>, vector<128x384xf32>, vector<8x384xf32> -> vector<8x384xf32>
    %74 = vector.extract_strided_slice %72 {offsets = [0, 0], sizes = [8, 128], strides = [1, 1]} : vector<8x384xf32> to vector<8x128xf32>
    %75 = vector.extract_strided_slice %72 {offsets = [0, 128], sizes = [8, 128], strides = [1, 1]} : vector<8x384xf32> to vector<8x128xf32>
    %76 = vector.extract_strided_slice %72 {offsets = [0, 256], sizes = [8, 128], strides = [1, 1]} : vector<8x384xf32> to vector<8x128xf32>
    %77 = vector.extract_strided_slice %73 {offsets = [0, 0], sizes = [8, 128], strides = [1, 1]} : vector<8x384xf32> to vector<8x128xf32>
    %78 = vector.extract_strided_slice %73 {offsets = [0, 128], sizes = [8, 128], strides = [1, 1]} : vector<8x384xf32> to vector<8x128xf32>
    %79 = vector.extract_strided_slice %73 {offsets = [0, 256], sizes = [8, 128], strides = [1, 1]} : vector<8x384xf32> to vector<8x128xf32>
    %80 = arith.addf %74, %77 : vector<8x128xf32>
    %81 = arith.negf %80 : vector<8x128xf32>
    %82 = math.exp %81 : vector<8x128xf32>
    %cst_21 = arith.constant 1.000000e+00 : f32
    %83 = vector.broadcast %cst_21 : f32 to vector<8x128xf32>
    %84 = arith.addf %83, %82 : vector<8x128xf32>
    %85 = arith.divf %83, %84 : vector<8x128xf32>
    %86 = arith.addf %75, %78 : vector<8x128xf32>
    %87 = arith.negf %86 : vector<8x128xf32>
    %88 = math.exp %87 : vector<8x128xf32>
    %cst_22 = arith.constant 1.000000e+00 : f32
    %89 = vector.broadcast %cst_22 : f32 to vector<8x128xf32>
    %90 = arith.addf %89, %88 : vector<8x128xf32>
    %91 = arith.divf %89, %90 : vector<8x128xf32>
    %92 = arith.addf %79, %6 : vector<8x128xf32>
    %93 = arith.mulf %85, %92 : vector<8x128xf32>
    %94 = arith.addf %76, %93 : vector<8x128xf32>
    %95 = math.tanh %94 : vector<8x128xf32>
    %cst_23 = arith.constant 1.000000e+00 : f32
    %96 = vector.broadcast %cst_23 : f32 to vector<8x128xf32>
    %97 = arith.subf %96, %91 : vector<8x128xf32>
    %98 = arith.mulf %97, %95 : vector<8x128xf32>
    %99 = arith.mulf %91, %69 : vector<8x128xf32>
    %100 = arith.addf %98, %99 : vector<8x128xf32>
    %c3_i32 = arith.constant 3 : i32
    %101 = arith.index_cast %c3_i32 : i32 to index
    %c0_24 = arith.constant 0 : index
    %c0_25 = arith.constant 0 : index
    %102 = vector.load %arg2[%101, %c0_24, %c0_25] : memref<8x8x384xf32, #tpu.memory_space<vmem>>, vector<1x8x384xf32>
    %103 = vector.shape_cast %102 : vector<1x8x384xf32> to vector<8x384xf32>
    %cst_26 = arith.constant dense<0.000000e+00> : vector<8x384xf32>
    %104 = tpu.matmul %100, %3, %cst_26 {dimension_numbers = #tpu.dot_dimension_numbers<[1], [0], [0], [1], [0, 0, 1, 1], [], []>} : vector<8x128xf32>, vector<128x384xf32>, vector<8x384xf32> -> vector<8x384xf32>
    %105 = vector.extract_strided_slice %103 {offsets = [0, 0], sizes = [8, 128], strides = [1, 1]} : vector<8x384xf32> to vector<8x128xf32>
    %106 = vector.extract_strided_slice %103 {offsets = [0, 128], sizes = [8, 128], strides = [1, 1]} : vector<8x384xf32> to vector<8x128xf32>
    %107 = vector.extract_strided_slice %103 {offsets = [0, 256], sizes = [8, 128], strides = [1, 1]} : vector<8x384xf32> to vector<8x128xf32>
    %108 = vector.extract_strided_slice %104 {offsets = [0, 0], sizes = [8, 128], strides = [1, 1]} : vector<8x384xf32> to vector<8x128xf32>
    %109 = vector.extract_strided_slice %104 {offsets = [0, 128], sizes = [8, 128], strides = [1, 1]} : vector<8x384xf32> to vector<8x128xf32>
    %110 = vector.extract_strided_slice %104 {offsets = [0, 256], sizes = [8, 128], strides = [1, 1]} : vector<8x384xf32> to vector<8x128xf32>
    %111 = arith.addf %105, %108 : vector<8x128xf32>
    %112 = arith.negf %111 : vector<8x128xf32>
    %113 = math.exp %112 : vector<8x128xf32>
    %cst_27 = arith.constant 1.000000e+00 : f32
    %114 = vector.broadcast %cst_27 : f32 to vector<8x128xf32>
    %115 = arith.addf %114, %113 : vector<8x128xf32>
    %116 = arith.divf %114, %115 : vector<8x128xf32>
    %117 = arith.addf %106, %109 : vector<8x128xf32>
    %118 = arith.negf %117 : vector<8x128xf32>
    %119 = math.exp %118 : vector<8x128xf32>
    %cst_28 = arith.constant 1.000000e+00 : f32
    %120 = vector.broadcast %cst_28 : f32 to vector<8x128xf32>
    %121 = arith.addf %120, %119 : vector<8x128xf32>
    %122 = arith.divf %120, %121 : vector<8x128xf32>
    %123 = arith.addf %110, %6 : vector<8x128xf32>
    %124 = arith.mulf %116, %123 : vector<8x128xf32>
    %125 = arith.addf %107, %124 : vector<8x128xf32>
    %126 = math.tanh %125 : vector<8x128xf32>
    %cst_29 = arith.constant 1.000000e+00 : f32
    %127 = vector.broadcast %cst_29 : f32 to vector<8x128xf32>
    %128 = arith.subf %127, %122 : vector<8x128xf32>
    %129 = arith.mulf %128, %126 : vector<8x128xf32>
    %130 = arith.mulf %122, %100 : vector<8x128xf32>
    %131 = arith.addf %129, %130 : vector<8x128xf32>
    %c4_i32 = arith.constant 4 : i32
    %132 = arith.index_cast %c4_i32 : i32 to index
    %c0_30 = arith.constant 0 : index
    %c0_31 = arith.constant 0 : index
    %133 = vector.load %arg2[%132, %c0_30, %c0_31] : memref<8x8x384xf32, #tpu.memory_space<vmem>>, vector<1x8x384xf32>
    %134 = vector.shape_cast %133 : vector<1x8x384xf32> to vector<8x384xf32>
    %cst_32 = arith.constant dense<0.000000e+00> : vector<8x384xf32>
    %135 = tpu.matmul %131, %3, %cst_32 {dimension_numbers = #tpu.dot_dimension_numbers<[1], [0], [0], [1], [0, 0, 1, 1], [], []>} : vector<8x128xf32>, vector<128x384xf32>, vector<8x384xf32> -> vector<8x384xf32>
    %136 = vector.extract_strided_slice %134 {offsets = [0, 0], sizes = [8, 128], strides = [1, 1]} : vector<8x384xf32> to vector<8x128xf32>
    %137 = vector.extract_strided_slice %134 {offsets = [0, 128], sizes = [8, 128], strides = [1, 1]} : vector<8x384xf32> to vector<8x128xf32>
    %138 = vector.extract_strided_slice %134 {offsets = [0, 256], sizes = [8, 128], strides = [1, 1]} : vector<8x384xf32> to vector<8x128xf32>
    %139 = vector.extract_strided_slice %135 {offsets = [0, 0], sizes = [8, 128], strides = [1, 1]} : vector<8x384xf32> to vector<8x128xf32>
    %140 = vector.extract_strided_slice %135 {offsets = [0, 128], sizes = [8, 128], strides = [1, 1]} : vector<8x384xf32> to vector<8x128xf32>
    %141 = vector.extract_strided_slice %135 {offsets = [0, 256], sizes = [8, 128], strides = [1, 1]} : vector<8x384xf32> to vector<8x128xf32>
    %142 = arith.addf %136, %139 : vector<8x128xf32>
    %143 = arith.negf %142 : vector<8x128xf32>
    %144 = math.exp %143 : vector<8x128xf32>
    %cst_33 = arith.constant 1.000000e+00 : f32
    %145 = vector.broadcast %cst_33 : f32 to vector<8x128xf32>
    %146 = arith.addf %145, %144 : vector<8x128xf32>
    %147 = arith.divf %145, %146 : vector<8x128xf32>
    %148 = arith.addf %137, %140 : vector<8x128xf32>
    %149 = arith.negf %148 : vector<8x128xf32>
    %150 = math.exp %149 : vector<8x128xf32>
    %cst_34 = arith.constant 1.000000e+00 : f32
    %151 = vector.broadcast %cst_34 : f32 to vector<8x128xf32>
    %152 = arith.addf %151, %150 : vector<8x128xf32>
    %153 = arith.divf %151, %152 : vector<8x128xf32>
    %154 = arith.addf %141, %6 : vector<8x128xf32>
    %155 = arith.mulf %147, %154 : vector<8x128xf32>
    %156 = arith.addf %138, %155 : vector<8x128xf32>
    %157 = math.tanh %156 : vector<8x128xf32>
    %cst_35 = arith.constant 1.000000e+00 : f32
    %158 = vector.broadcast %cst_35 : f32 to vector<8x128xf32>
    %159 = arith.subf %158, %153 : vector<8x128xf32>
    %160 = arith.mulf %159, %157 : vector<8x128xf32>
    %161 = arith.mulf %153, %131 : vector<8x128xf32>
    %162 = arith.addf %160, %161 : vector<8x128xf32>
    %c5_i32 = arith.constant 5 : i32
    %163 = arith.index_cast %c5_i32 : i32 to index
    %c0_36 = arith.constant 0 : index
    %c0_37 = arith.constant 0 : index
    %164 = vector.load %arg2[%163, %c0_36, %c0_37] : memref<8x8x384xf32, #tpu.memory_space<vmem>>, vector<1x8x384xf32>
    %165 = vector.shape_cast %164 : vector<1x8x384xf32> to vector<8x384xf32>
    %cst_38 = arith.constant dense<0.000000e+00> : vector<8x384xf32>
    %166 = tpu.matmul %162, %3, %cst_38 {dimension_numbers = #tpu.dot_dimension_numbers<[1], [0], [0], [1], [0, 0, 1, 1], [], []>} : vector<8x128xf32>, vector<128x384xf32>, vector<8x384xf32> -> vector<8x384xf32>
    %167 = vector.extract_strided_slice %165 {offsets = [0, 0], sizes = [8, 128], strides = [1, 1]} : vector<8x384xf32> to vector<8x128xf32>
    %168 = vector.extract_strided_slice %165 {offsets = [0, 128], sizes = [8, 128], strides = [1, 1]} : vector<8x384xf32> to vector<8x128xf32>
    %169 = vector.extract_strided_slice %165 {offsets = [0, 256], sizes = [8, 128], strides = [1, 1]} : vector<8x384xf32> to vector<8x128xf32>
    %170 = vector.extract_strided_slice %166 {offsets = [0, 0], sizes = [8, 128], strides = [1, 1]} : vector<8x384xf32> to vector<8x128xf32>
    %171 = vector.extract_strided_slice %166 {offsets = [0, 128], sizes = [8, 128], strides = [1, 1]} : vector<8x384xf32> to vector<8x128xf32>
    %172 = vector.extract_strided_slice %166 {offsets = [0, 256], sizes = [8, 128], strides = [1, 1]} : vector<8x384xf32> to vector<8x128xf32>
    %173 = arith.addf %167, %170 : vector<8x128xf32>
    %174 = arith.negf %173 : vector<8x128xf32>
    %175 = math.exp %174 : vector<8x128xf32>
    %cst_39 = arith.constant 1.000000e+00 : f32
    %176 = vector.broadcast %cst_39 : f32 to vector<8x128xf32>
    %177 = arith.addf %176, %175 : vector<8x128xf32>
    %178 = arith.divf %176, %177 : vector<8x128xf32>
    %179 = arith.addf %168, %171 : vector<8x128xf32>
    %180 = arith.negf %179 : vector<8x128xf32>
    %181 = math.exp %180 : vector<8x128xf32>
    %cst_40 = arith.constant 1.000000e+00 : f32
    %182 = vector.broadcast %cst_40 : f32 to vector<8x128xf32>
    %183 = arith.addf %182, %181 : vector<8x128xf32>
    %184 = arith.divf %182, %183 : vector<8x128xf32>
    %185 = arith.addf %172, %6 : vector<8x128xf32>
    %186 = arith.mulf %178, %185 : vector<8x128xf32>
    %187 = arith.addf %169, %186 : vector<8x128xf32>
    %188 = math.tanh %187 : vector<8x128xf32>
    %cst_41 = arith.constant 1.000000e+00 : f32
    %189 = vector.broadcast %cst_41 : f32 to vector<8x128xf32>
    %190 = arith.subf %189, %184 : vector<8x128xf32>
    %191 = arith.mulf %190, %188 : vector<8x128xf32>
    %192 = arith.mulf %184, %162 : vector<8x128xf32>
    %193 = arith.addf %191, %192 : vector<8x128xf32>
    %c6_i32 = arith.constant 6 : i32
    %194 = arith.index_cast %c6_i32 : i32 to index
    %c0_42 = arith.constant 0 : index
    %c0_43 = arith.constant 0 : index
    %195 = vector.load %arg2[%194, %c0_42, %c0_43] : memref<8x8x384xf32, #tpu.memory_space<vmem>>, vector<1x8x384xf32>
    %196 = vector.shape_cast %195 : vector<1x8x384xf32> to vector<8x384xf32>
    %cst_44 = arith.constant dense<0.000000e+00> : vector<8x384xf32>
    %197 = tpu.matmul %193, %3, %cst_44 {dimension_numbers = #tpu.dot_dimension_numbers<[1], [0], [0], [1], [0, 0, 1, 1], [], []>} : vector<8x128xf32>, vector<128x384xf32>, vector<8x384xf32> -> vector<8x384xf32>
    %198 = vector.extract_strided_slice %196 {offsets = [0, 0], sizes = [8, 128], strides = [1, 1]} : vector<8x384xf32> to vector<8x128xf32>
    %199 = vector.extract_strided_slice %196 {offsets = [0, 128], sizes = [8, 128], strides = [1, 1]} : vector<8x384xf32> to vector<8x128xf32>
    %200 = vector.extract_strided_slice %196 {offsets = [0, 256], sizes = [8, 128], strides = [1, 1]} : vector<8x384xf32> to vector<8x128xf32>
    %201 = vector.extract_strided_slice %197 {offsets = [0, 0], sizes = [8, 128], strides = [1, 1]} : vector<8x384xf32> to vector<8x128xf32>
    %202 = vector.extract_strided_slice %197 {offsets = [0, 128], sizes = [8, 128], strides = [1, 1]} : vector<8x384xf32> to vector<8x128xf32>
    %203 = vector.extract_strided_slice %197 {offsets = [0, 256], sizes = [8, 128], strides = [1, 1]} : vector<8x384xf32> to vector<8x128xf32>
    %204 = arith.addf %198, %201 : vector<8x128xf32>
    %205 = arith.negf %204 : vector<8x128xf32>
    %206 = math.exp %205 : vector<8x128xf32>
    %cst_45 = arith.constant 1.000000e+00 : f32
    %207 = vector.broadcast %cst_45 : f32 to vector<8x128xf32>
    %208 = arith.addf %207, %206 : vector<8x128xf32>
    %209 = arith.divf %207, %208 : vector<8x128xf32>
    %210 = arith.addf %199, %202 : vector<8x128xf32>
    %211 = arith.negf %210 : vector<8x128xf32>
    %212 = math.exp %211 : vector<8x128xf32>
    %cst_46 = arith.constant 1.000000e+00 : f32
    %213 = vector.broadcast %cst_46 : f32 to vector<8x128xf32>
    %214 = arith.addf %213, %212 : vector<8x128xf32>
    %215 = arith.divf %213, %214 : vector<8x128xf32>
    %216 = arith.addf %203, %6 : vector<8x128xf32>
    %217 = arith.mulf %209, %216 : vector<8x128xf32>
    %218 = arith.addf %200, %217 : vector<8x128xf32>
    %219 = math.tanh %218 : vector<8x128xf32>
    %cst_47 = arith.constant 1.000000e+00 : f32
    %220 = vector.broadcast %cst_47 : f32 to vector<8x128xf32>
    %221 = arith.subf %220, %215 : vector<8x128xf32>
    %222 = arith.mulf %221, %219 : vector<8x128xf32>
    %223 = arith.mulf %215, %193 : vector<8x128xf32>
    %224 = arith.addf %222, %223 : vector<8x128xf32>
    %c7_i32 = arith.constant 7 : i32
    %225 = arith.index_cast %c7_i32 : i32 to index
    %c0_48 = arith.constant 0 : index
    %c0_49 = arith.constant 0 : index
    %226 = vector.load %arg2[%225, %c0_48, %c0_49] : memref<8x8x384xf32, #tpu.memory_space<vmem>>, vector<1x8x384xf32>
    %227 = vector.shape_cast %226 : vector<1x8x384xf32> to vector<8x384xf32>
    %cst_50 = arith.constant dense<0.000000e+00> : vector<8x384xf32>
    %228 = tpu.matmul %224, %3, %cst_50 {dimension_numbers = #tpu.dot_dimension_numbers<[1], [0], [0], [1], [0, 0, 1, 1], [], []>} : vector<8x128xf32>, vector<128x384xf32>, vector<8x384xf32> -> vector<8x384xf32>
    %229 = vector.extract_strided_slice %227 {offsets = [0, 0], sizes = [8, 128], strides = [1, 1]} : vector<8x384xf32> to vector<8x128xf32>
    %230 = vector.extract_strided_slice %227 {offsets = [0, 128], sizes = [8, 128], strides = [1, 1]} : vector<8x384xf32> to vector<8x128xf32>
    %231 = vector.extract_strided_slice %227 {offsets = [0, 256], sizes = [8, 128], strides = [1, 1]} : vector<8x384xf32> to vector<8x128xf32>
    %232 = vector.extract_strided_slice %228 {offsets = [0, 0], sizes = [8, 128], strides = [1, 1]} : vector<8x384xf32> to vector<8x128xf32>
    %233 = vector.extract_strided_slice %228 {offsets = [0, 128], sizes = [8, 128], strides = [1, 1]} : vector<8x384xf32> to vector<8x128xf32>
    %234 = vector.extract_strided_slice %228 {offsets = [0, 256], sizes = [8, 128], strides = [1, 1]} : vector<8x384xf32> to vector<8x128xf32>
    %235 = arith.addf %229, %232 : vector<8x128xf32>
    %236 = arith.negf %235 : vector<8x128xf32>
    %237 = math.exp %236 : vector<8x128xf32>
    %cst_51 = arith.constant 1.000000e+00 : f32
    %238 = vector.broadcast %cst_51 : f32 to vector<8x128xf32>
    %239 = arith.addf %238, %237 : vector<8x128xf32>
    %240 = arith.divf %238, %239 : vector<8x128xf32>
    %241 = arith.addf %230, %233 : vector<8x128xf32>
    %242 = arith.negf %241 : vector<8x128xf32>
    %243 = math.exp %242 : vector<8x128xf32>
    %cst_52 = arith.constant 1.000000e+00 : f32
    %244 = vector.broadcast %cst_52 : f32 to vector<8x128xf32>
    %245 = arith.addf %244, %243 : vector<8x128xf32>
    %246 = arith.divf %244, %245 : vector<8x128xf32>
    %247 = arith.addf %234, %6 : vector<8x128xf32>
    %248 = arith.mulf %240, %247 : vector<8x128xf32>
    %249 = arith.addf %231, %248 : vector<8x128xf32>
    %250 = math.tanh %249 : vector<8x128xf32>
    %cst_53 = arith.constant 1.000000e+00 : f32
    %251 = vector.broadcast %cst_53 : f32 to vector<8x128xf32>
    %252 = arith.subf %251, %246 : vector<8x128xf32>
    %253 = arith.mulf %252, %250 : vector<8x128xf32>
    %254 = arith.mulf %246, %224 : vector<8x128xf32>
    %255 = arith.addf %253, %254 : vector<8x128xf32>
    %c8_i32 = arith.constant 8 : i32
    %c0_54 = arith.constant 0 : index
    %c0_55 = arith.constant 0 : index
    %256 = vector.load %arg5[%c0_54, %c0_55] : memref<8x128xf32, #tpu.memory_space<vmem>>, vector<8x128xf32>
    tpu.vector_store %arg5[%c0_54, %c0_55], %255 {strides = array<i32>} : memref<8x128xf32, #tpu.memory_space<vmem>>, vector<8x128xf32>,
    return
  }
  func.func @transform_0(%arg0: i32, %arg1: i32) -> (i32, i32, i32) {
    %c0_i32 = arith.constant 0 : i32
    %c0_i32_0 = arith.constant 0 : i32
    return %arg1, %arg0, %c0_i32 : i32, i32, i32
  }
  func.func @transform_1(%arg0: i32, %arg1: i32) -> (i32, i32) {
    %c0_i32 = arith.constant 0 : i32
    %c0_i32_0 = arith.constant 0 : i32
    %c0_i32_1 = arith.constant 0 : i32
    return %c0_i32, %c0_i32_0 : i32, i32
  }
  func.func @transform_2(%arg0: i32, %arg1: i32) -> (i32, i32) {
    %c0_i32 = arith.constant 0 : i32
    %c0_i32_0 = arith.constant 0 : i32
    %c0_i32_1 = arith.constant 0 : i32
    return %c0_i32, %c0_i32_0 : i32, i32
  }
  func.func @transform_3(%arg0: i32, %arg1: i32) -> (i32, i32) {
    %c0_i32 = arith.constant 0 : i32
    %c0_i32_0 = arith.constant 0 : i32
    return %arg0, %c0_i32 : i32, i32
  }
}

</mosaic_0001>

<llo_original>
// kernel: tpu_custom_call.1
$region0: #{tpu_custom_call.1}
  #allocation0 [shape = 'u32[]', space=smem, size = 0x4, offset = 0x4, fixed_abs, tag = 'smem constant byte address 0x4 - core index']
  #allocation1 [shape = 'u32[72,128]{1,0:T(1,128)}', space=vmem, size = 0x9000, scoped, tag = 'internal scratch']
  %s0 = inlined_call_operand.hbm [shape: f32[8,8,384], index: 0, kind: input, shape index: {}]
  %s1 = inlined_call_operand.hbm [shape: f32[128,384], index: 1, kind: input, shape index: {}]
  %s2 = inlined_call_operand.vmem [shape: f32[1,128], index: 2, kind: input, shape index: {}]
  %s3 = inlined_call_operand.hbm [shape: f32[8,128], index: 3, kind: output, shape index: {}]
  %s4 = sld [smem:[#allocation0]]
  $region34: #{tpu_custom_call.1} parent=0
    _
  %s6 = ssub.s32 1, %s4
  %s7 = scalar_select 0, %s6, %s4
  $region1: #{tpu_custom_call.1} parent=0
    #allocation2 [shape = 'u8[98304]{0}', space=vmem, size = 0x18000, scoped, tag = 'input window, operand 0, single buffered']
    #allocation3 [shape = 's32[1]{0}', space=sflag, size = 0x4, scoped, tag = 'scoped memory for tpu_custom_call.1']
    #allocation4 [shape = 's32[1]{0}', space=sflag, size = 0x4, scoped, tag = 'scoped memory for tpu_custom_call.1']
    #allocation5 [shape = 'u8[196608]{0}', space=vmem, size = 0x30000, scoped, tag = 'input window, operand 1, single buffered']
    #allocation6 [shape = 's32[1]{0}', space=sflag, size = 0x4, scoped, tag = 'scoped memory for tpu_custom_call.1']
    #allocation7 [shape = 'u8[4096]{0}', space=vmem, size = 0x1000, scoped, tag = 'output window, operand 0, single buffered']
    %8 = vsyncpa [#allocation3], 0
    %9 = vsyncpa [#allocation6], 0
    %10 = vsyncpa [#allocation4], 0
    // Predicated region
    $region2: #{tpu_custom_call.1} parent=1 // pred_check
      _
    $region3: #{tpu_custom_call.1} parent=1 // pred_check_branch
      %12 = sbr.rel (0) target = $region5
    $region4: #{tpu_custom_call.1} parent=1 // pred_region
      %14 = vsyncadd [#allocation3], 0
      %s15 = sshll.u32 %s0, 4
      %s16 = int_to_ptr.hbm [resolvable:$true] %s15
      %s17 = sshll.u32 [#allocation2], 4
      %s18 = int_to_ptr.vmem [resolvable:$true] %s17
      %23 = dma.hbm_to_vmem [thread:$0]  %s16, 3072, %s18, [#allocation3], 384, 384, 24
    $region5: #{tpu_custom_call.1} parent=1 // pred_fallthru
      _
    // Predicated region
    $region6: #{tpu_custom_call.1} parent=1 // pred_check
      _
    $region7: #{tpu_custom_call.1} parent=1 // pred_check_branch
      %25 = sbr.rel (0) target = $region9
    $region8: #{tpu_custom_call.1} parent=1 // pred_region
      %27 = vsyncadd [#allocation6], 0
      %s28 = sshll.u32 %s1, 4
      %s29 = int_to_ptr.hbm [resolvable:$true] %s28
      %s30 = sshll.u32 [#allocation5], 4
      %s31 = int_to_ptr.vmem [resolvable:$true] %s30
      %36 = dma.hbm_to_vmem [thread:$0]  %s29, 6144, %s31, [#allocation6], 384, 384, 24
    $region9: #{tpu_custom_call.1} parent=1 // pred_fallthru
      _
    // Predicated region
    $region10: #{tpu_custom_call.1} parent=1 // pred_check
      _
    $region11: #{tpu_custom_call.1} parent=1 // pred_check_branch
      %38 = sbr.rel (0) target = $region13
    $region12: #{tpu_custom_call.1} parent=1 // pred_region
      _
    $region13: #{tpu_custom_call.1} parent=1 // pred_fallthru
      _
    // Predicated region
    $region14: #{tpu_custom_call.1} parent=1 // pred_check
      _
    $region15: #{tpu_custom_call.1} parent=1 // pred_check_branch
      %40 = sbr.rel (0) target = $region17
    $region16: #{tpu_custom_call.1} parent=1 // pred_region
      %42 = dma.done [#allocation3], 3072
    $region17: #{tpu_custom_call.1} parent=1 // pred_fallthru
      _
    // Predicated region
    $region18: #{tpu_custom_call.1} parent=1 // pred_check
      _
    $region19: #{tpu_custom_call.1} parent=1 // pred_check_branch
      %44 = sbr.rel (0) target = $region21
    $region20: #{tpu_custom_call.1} parent=1 // pred_region
      %46 = dma.done [#allocation6], 6144
    $region21: #{tpu_custom_call.1} parent=1 // pred_fallthru
      _
    %p47 = scmp.eq.s32.totalorder 0, 0
    // Predicated region
    $region22: #{tpu_custom_call.1} parent=1 // pred_check
      %p48 = pneg %p47
    $region23: #{tpu_custom_call.1} parent=1 // pred_check_branch
      %50 = sbr.rel (%p48) target = $region25
    $region24: #{tpu_custom_call.1} parent=1 // pred_region
      %51 = vst [vmem:[#allocation7] sm:$0xff] 0.0
    $region25: #{tpu_custom_call.1} parent=1 // pred_fallthru
      _
    %v52 = vld [vmem:[#allocation5] sm:$0xff]
    %v53 = vld [vmem:[#allocation5 + $0x8] sm:$0xff]
    %v54 = vld [vmem:[#allocation5 + $0x10] sm:$0xff]
    %v55 = vld [vmem:[#allocation5 + $0x18] sm:$0xff]
    %v56 = vld [vmem:[#allocation5 + $0x20] sm:$0xff]
    %v57 = vld [vmem:[#allocation5 + $0x28] sm:$0xff]
    %v58 = vld [vmem:[#allocation5 + $0x30] sm:$0xff]
    %v59 = vld [vmem:[#allocation5 + $0x38] sm:$0xff]
    %v60 = vld [vmem:[#allocation5 + $0x40] sm:$0xff]
    %v61 = vld [vmem:[#allocation5 + $0x48] sm:$0xff]
    %v62 = vld [vmem:[#allocation5 + $0x50] sm:$0xff]
    %v63 = vld [vmem:[#allocation5 + $0x58] sm:$0xff]
    %v64 = vld [vmem:[#allocation5 + $0x60] sm:$0xff]
    %v65 = vld [vmem:[#allocation5 + $0x68] sm:$0xff]
    %v66 = vld [vmem:[#allocation5 + $0x70] sm:$0xff]
    %v67 = vld [vmem:[#allocation5 + $0x78] sm:$0xff]
    %v68 = vld [vmem:[#allocation5 + $0x80] sm:$0xff]
    %v69 = vld [vmem:[#allocation5 + $0x88] sm:$0xff]
    %v70 = vld [vmem:[#allocation5 + $0x90] sm:$0xff]
    %v71 = vld [vmem:[#allocation5 + $0x98] sm:$0xff]
    %v72 = vld [vmem:[#allocation5 + $0xa0] sm:$0xff]
    %v73 = vld [vmem:[#allocation5 + $0xa8] sm:$0xff]
    %v74 = vld [vmem:[#allocation5 + $0xb0] sm:$0xff]
    %v75 = vld [vmem:[#allocation5 + $0xb8] sm:$0xff]
    %v76 = vld [vmem:[#allocation5 + $0xc0] sm:$0xff]
    %v77 = vld [vmem:[#allocation5 + $0xc8] sm:$0xff]
    %v78 = vld [vmem:[#allocation5 + $0xd0] sm:$0xff]
    %v79 = vld [vmem:[#allocation5 + $0xd8] sm:$0xff]
    %v80 = vld [vmem:[#allocation5 + $0xe0] sm:$0xff]
    %v81 = vld [vmem:[#allocation5 + $0xe8] sm:$0xff]
    %v82 = vld [vmem:[#allocation5 + $0xf0] sm:$0xff]
    %v83 = vld [vmem:[#allocation5 + $0xf8] sm:$0xff]
    %v84 = vld [vmem:[#allocation5 + $0x100] sm:$0xff]
    %v85 = vld [vmem:[#allocation5 + $0x108] sm:$0xff]
    %v86 = vld [vmem:[#allocation5 + $0x110] sm:$0xff]
    %v87 = vld [vmem:[#allocation5 + $0x118] sm:$0xff]
    %v88 = vld [vmem:[#allocation5 + $0x120] sm:$0xff]
    %v89 = vld [vmem:[#allocation5 + $0x128] sm:$0xff]
    %v90 = vld [vmem:[#allocation5 + $0x130] sm:$0xff]
    %v91 = vld [vmem:[#allocation5 + $0x138] sm:$0xff]
    %v92 = vld [vmem:[#allocation5 + $0x140] sm:$0xff]
    %v93 = vld [vmem:[#allocation5 + $0x148] sm:$0xff]
    %v94 = vld [vmem:[#allocation5 + $0x150] sm:$0xff]
    %v95 = vld [vmem:[#allocation5 + $0x158] sm:$0xff]
    %v96 = vld [vmem:[#allocation5 + $0x160] sm:$0xff]
    %v97 = vld [vmem:[#allocation5 + $0x168] sm:$0xff]
    %v98 = vld [vmem:[#allocation5 + $0x170] sm:$0xff]
    %v99 = vld [vmem:[#allocation5 + $0x178] sm:$0xff]
    %v100 = vld [vmem:[%s2] sm:$0x1]
    %v102 = vperm.slane %v100, 0
    %v104 = vld [vmem:[#allocation7] sm:$0xff]
    %v105 = vld [vmem:[#allocation2] sm:$0xff]
    %v106 = vld [vmem:[#allocation2 + $0x8] sm:$0xff]
    %v107 = vld [vmem:[#allocation2 + $0x10] sm:$0xff]
    %108 = vmatpush.msra.mxu0 %v97
    %109 = vmatpush.msra.mxu0 %v94
    %110 = vmatpush.msra.mxu0 %v91
    %111 = vmatpush.msra.mxu0 %v88
    %112 = vmatpush.msra.mxu0 %v85
    %113 = vmatpush.msra.mxu0 %v82
    %114 = vmatpush.msra.mxu0 %v79
    %115 = vmatpush.msra.mxu0 %v76
    %116 = vmatpush.msra.mxu0 %v73
    %117 = vmatpush.msra.mxu0 %v70
    %118 = vmatpush.msra.mxu0 %v67
    %119 = vmatpush.msra.mxu0 %v64
    %120 = vmatpush.msra.mxu0 %v61
    %121 = vmatpush.msra.mxu0 %v58
    %122 = vmatpush.msra.mxu0 %v55
    %123 = vmatpush.msra.mxu0 %v52
    %124 = vmatmul.f32.gmra.mxu0 %v104
    %v125 = vpop.f32.mrf.mxu0
    %v126 = vadd.f32 0.0, %v125
    %127 = vdwg.mxu0
    %128 = vmatpush.msra.mxu0 %v98
    %129 = vmatpush.msra.mxu0 %v95
    %130 = vmatpush.msra.mxu0 %v92
    %131 = vmatpush.msra.mxu0 %v89
    %132 = vmatpush.msra.mxu0 %v86
    %133 = vmatpush.msra.mxu0 %v83
    %134 = vmatpush.msra.mxu0 %v80
    %135 = vmatpush.msra.mxu0 %v77
    %136 = vmatpush.msra.mxu0 %v74
    %137 = vmatpush.msra.mxu0 %v71
    %138 = vmatpush.msra.mxu0 %v68
    %139 = vmatpush.msra.mxu0 %v65
    %140 = vmatpush.msra.mxu0 %v62
    %141 = vmatpush.msra.mxu0 %v59
    %142 = vmatpush.msra.mxu0 %v56
    %143 = vmatpush.msra.mxu0 %v53
    %144 = vmatmul.f32.gmra.mxu0 %v104
    %v145 = vpop.f32.mrf.mxu0
    %v146 = vadd.f32 0.0, %v145
    %147 = vdwg.mxu0
    %148 = vmatpush.msra.mxu0 %v99
    %149 = vmatpush.msra.mxu0 %v96
    %150 = vmatpush.msra.mxu0 %v93
    %151 = vmatpush.msra.mxu0 %v90
    %152 = vmatpush.msra.mxu0 %v87
    %153 = vmatpush.msra.mxu0 %v84
    %154 = vmatpush.msra.mxu0 %v81
    %155 = vmatpush.msra.mxu0 %v78
    %156 = vmatpush.msra.mxu0 %v75
    %157 = vmatpush.msra.mxu0 %v72
    %158 = vmatpush.msra.mxu0 %v69
    %159 = vmatpush.msra.mxu0 %v66
    %160 = vmatpush.msra.mxu0 %v63
    %161 = vmatpush.msra.mxu0 %v60
    %162 = vmatpush.msra.mxu0 %v57
    %163 = vmatpush.msra.mxu0 %v54
    %164 = vmatmul.f32.gmra.mxu0 %v104
    %v165 = vpop.f32.mrf.mxu0
    %v166 = vadd.f32 0.0, %v165
    %167 = vdwg.mxu0
    %v168 = vadd.f32 %v105, %v126
    %v169 = vxor.u32 %v168, 2147483648
    %v170 = vmul.f32 %v169, 1.442695
    %v171 = vpow.pop %v170
    %v172 = vadd.f32 %v171, 1.0
    %v173 = vrcp.pop %v172
    %v174 = vmul.f32 %v172, %v173
    %v175 = vsub.f32 1.0, %v174
    %v176 = vmul.f32 %v173, %v175
    %v177 = vadd.f32 %v173, %v176
    %vm178 = vweird.f32 %v172
    %vm179 = vweird.f32 %v173
    %vm180 = vmor %vm178, %vm179
    %v181 = vsel %vm180, %v173, %v177
    %v182 = vand.u32 2147483647, %v172
    %vm183 = vcmp.eq.f32.partialorder %v182, 8.507059e+37
    %v184 = vand.u32 %v172, 2147483648
    %v185 = vor.u32 1.1754944e-38, %v184
    %v186 = vsel %vm183, %v185, %v181
    %v187 = vmul.f32 1.0, %v186
    %v188 = vadd.f32 %v106, %v146
    %v189 = vxor.u32 %v188, 2147483648
    %v190 = vmul.f32 %v189, 1.442695
    %v191 = vpow.pop %v190
    %v192 = vadd.f32 %v191, 1.0
    %v193 = vrcp.pop %v192
    %v194 = vmul.f32 %v192, %v193
    %v195 = vsub.f32 1.0, %v194
    %v196 = vmul.f32 %v193, %v195
    %v197 = vadd.f32 %v193, %v196
    %vm198 = vweird.f32 %v192
    %vm199 = vweird.f32 %v193
    %vm200 = vmor %vm198, %vm199
    %v201 = vsel %vm200, %v193, %v197
    %v202 = vand.u32 2147483647, %v192
    %vm203 = vcmp.eq.f32.partialorder %v202, 8.507059e+37
    %v204 = vand.u32 %v192, 2147483648
    %v205 = vor.u32 1.1754944e-38, %v204
    %v206 = vsel %vm203, %v205, %v201
    %v207 = vmul.f32 1.0, %v206
    %v208 = vadd.f32 %v166, %v102
    %v209 = vmul.f32 %v187, %v208
    %v210 = vadd.f32 %v107, %v209
    %v211 = vtanh.pop %v210
    %v212 = vsub.f32 1.0, %v207
    %v213 = vmul.f32 %v212, %v211
    %v214 = vmul.f32 %v207, %v104
    %v215 = vadd.f32 %v213, %v214
    %s216 = scalar_lea.vmem [#allocation2], 24
    %v217 = vld [vmem:[%s216] sm:$0xff]
    %v218 = vld [vmem:[%s216 + $0x8] sm:$0xff]
    %v219 = vld [vmem:[%s216 + $0x10] sm:$0xff]
    %220 = vmatpush.msra.mxu0 %v97
    %221 = vmatpush.msra.mxu0 %v94
    %222 = vmatpush.msra.mxu0 %v91
    %223 = vmatpush.msra.mxu0 %v88
    %224 = vmatpush.msra.mxu0 %v85
    %225 = vmatpush.msra.mxu0 %v82
    %226 = vmatpush.msra.mxu0 %v79
    %227 = vmatpush.msra.mxu0 %v76
    %228 = vmatpush.msra.mxu0 %v73
    %229 = vmatpush.msra.mxu0 %v70
    %230 = vmatpush.msra.mxu0 %v67
    %231 = vmatpush.msra.mxu0 %v64
    %232 = vmatpush.msra.mxu0 %v61
    %233 = vmatpush.msra.mxu0 %v58
    %234 = vmatpush.msra.mxu0 %v55
    %235 = vmatpush.msra.mxu0 %v52
    %236 = vmatmul.f32.gmra.mxu0 %v215
    %v237 = vpop.f32.mrf.mxu0
    %v238 = vadd.f32 0.0, %v237
    %239 = vdwg.mxu0
    %240 = vmatpush.msra.mxu0 %v98
    %241 = vmatpush.msra.mxu0 %v95
    %242 = vmatpush.msra.mxu0 %v92
    %243 = vmatpush.msra.mxu0 %v89
    %244 = vmatpush.msra.mxu0 %v86
    %245 = vmatpush.msra.mxu0 %v83
    %246 = vmatpush.msra.mxu0 %v80
    %247 = vmatpush.msra.mxu0 %v77
    %248 = vmatpush.msra.mxu0 %v74
    %249 = vmatpush.msra.mxu0 %v71
    %250 = vmatpush.msra.mxu0 %v68
    %251 = vmatpush.msra.mxu0 %v65
    %252 = vmatpush.msra.mxu0 %v62
    %253 = vmatpush.msra.mxu0 %v59
    %254 = vmatpush.msra.mxu0 %v56
    %255 = vmatpush.msra.mxu0 %v53
    %256 = vmatmul.f32.gmra.mxu0 %v215
    %v257 = vpop.f32.mrf.mxu0
    %v258 = vadd.f32 0.0, %v257
    %259 = vdwg.mxu0
    %260 = vmatpush.msra.mxu0 %v99
    %261 = vmatpush.msra.mxu0 %v96
    %262 = vmatpush.msra.mxu0 %v93
    %263 = vmatpush.msra.mxu0 %v90
    %264 = vmatpush.msra.mxu0 %v87
    %265 = vmatpush.msra.mxu0 %v84
    %266 = vmatpush.msra.mxu0 %v81
    %267 = vmatpush.msra.mxu0 %v78
    %268 = vmatpush.msra.mxu0 %v75
    %269 = vmatpush.msra.mxu0 %v72
    %270 = vmatpush.msra.mxu0 %v69
    %271 = vmatpush.msra.mxu0 %v66
    %272 = vmatpush.msra.mxu0 %v63
    %273 = vmatpush.msra.mxu0 %v60
    %274 = vmatpush.msra.mxu0 %v57
    %275 = vmatpush.msra.mxu0 %v54
    %276 = vmatmul.f32.gmra.mxu0 %v215
    %v277 = vpop.f32.mrf.mxu0
    %v278 = vadd.f32 0.0, %v277
    %279 = vdwg.mxu0
    %v280 = vadd.f32 %v217, %v238
    %v281 = vxor.u32 %v280, 2147483648
    %v282 = vmul.f32 %v281, 1.442695
    %v283 = vpow.pop %v282
    %v284 = vadd.f32 %v283, 1.0
    %v285 = vrcp.pop %v284
    %v286 = vmul.f32 %v284, %v285
    %v287 = vsub.f32 1.0, %v286
    %v288 = vmul.f32 %v285, %v287
    %v289 = vadd.f32 %v285, %v288
    %vm290 = vweird.f32 %v284
    %vm291 = vweird.f32 %v285
    %vm292 = vmor %vm290, %vm291
    %v293 = vsel %vm292, %v285, %v289
    %v294 = vand.u32 2147483647, %v284
    %vm295 = vcmp.eq.f32.partialorder %v294, 8.507059e+37
    %v296 = vand.u32 %v284, 2147483648
    %v297 = vor.u32 1.1754944e-38, %v296
    %v298 = vsel %vm295, %v297, %v293
    %v299 = vmul.f32 1.0, %v298
    %v300 = vadd.f32 %v218, %v258
    %v301 = vxor.u32 %v300, 2147483648
    %v302 = vmul.f32 %v301, 1.442695
    %v303 = vpow.pop %v302
    %v304 = vadd.f32 %v303, 1.0
    %v305 = vrcp.pop %v304
    %v306 = vmul.f32 %v304, %v305
    %v307 = vsub.f32 1.0, %v306
    %v308 = vmul.f32 %v305, %v307
    %v309 = vadd.f32 %v305, %v308
    %vm310 = vweird.f32 %v304
    %vm311 = vweird.f32 %v305
    %vm312 = vmor %vm310, %vm311
    %v313 = vsel %vm312, %v305, %v309
    %v314 = vand.u32 2147483647, %v304
    %vm315 = vcmp.eq.f32.partialorder %v314, 8.507059e+37
    %v316 = vand.u32 %v304, 2147483648
    %v317 = vor.u32 1.1754944e-38, %v316
    %v318 = vsel %vm315, %v317, %v313
    %v319 = vmul.f32 1.0, %v318
    %v320 = vadd.f32 %v278, %v102
    %v321 = vmul.f32 %v299, %v320
    %v322 = vadd.f32 %v219, %v321
    %v323 = vtanh.pop %v322
    %v324 = vsub.f32 1.0, %v319
    %v325 = vmul.f32 %v324, %v323
    %v326 = vmul.f32 %v319, %v215
    %v327 = vadd.f32 %v325, %v326
    %s328 = scalar_lea.vmem [#allocation2], 48
    %v329 = vld [vmem:[%s328] sm:$0xff]
    %v330 = vld [vmem:[%s328 + $0x8] sm:$0xff]
    %v331 = vld [vmem:[%s328 + $0x10] sm:$0xff]
    %332 = vmatpush.msra.mxu0 %v97
    %333 = vmatpush.msra.mxu0 %v94
    %334 = vmatpush.msra.mxu0 %v91
    %335 = vmatpush.msra.mxu0 %v88
    %336 = vmatpush.msra.mxu0 %v85
    %337 = vmatpush.msra.mxu0 %v82
    %338 = vmatpush.msra.mxu0 %v79
    %339 = vmatpush.msra.mxu0 %v76
    %340 = vmatpush.msra.mxu0 %v73
    %341 = vmatpush.msra.mxu0 %v70
    %342 = vmatpush.msra.mxu0 %v67
    %343 = vmatpush.msra.mxu0 %v64
    %344 = vmatpush.msra.mxu0 %v61
    %345 = vmatpush.msra.mxu0 %v58
    %346 = vmatpush.msra.mxu0 %v55
    %347 = vmatpush.msra.mxu0 %v52
    %348 = vmatmul.f32.gmra.mxu0 %v327
    %v349 = vpop.f32.mrf.mxu0
    %v350 = vadd.f32 0.0, %v349
    %351 = vdwg.mxu0
    %352 = vmatpush.msra.mxu0 %v98
    %353 = vmatpush.msra.mxu0 %v95
    %354 = vmatpush.msra.mxu0 %v92
    %355 = vmatpush.msra.mxu0 %v89
    %356 = vmatpush.msra.mxu0 %v86
    %357 = vmatpush.msra.mxu0 %v83
    %358 = vmatpush.msra.mxu0 %v80
    %359 = vmatpush.msra.mxu0 %v77
    %360 = vmatpush.msra.mxu0 %v74
    %361 = vmatpush.msra.mxu0 %v71
    %362 = vmatpush.msra.mxu0 %v68
    %363 = vmatpush.msra.mxu0 %v65
    %364 = vmatpush.msra.mxu0 %v62
    %365 = vmatpush.msra.mxu0 %v59
    %366 = vmatpush.msra.mxu0 %v56
    %367 = vmatpush.msra.mxu0 %v53
    %368 = vmatmul.f32.gmra.mxu0 %v327
    %v369 = vpop.f32.mrf.mxu0
    %v370 = vadd.f32 0.0, %v369
    %371 = vdwg.mxu0
    %372 = vmatpush.msra.mxu0 %v99
    %373 = vmatpush.msra.mxu0 %v96
    %374 = vmatpush.msra.mxu0 %v93
    %375 = vmatpush.msra.mxu0 %v90
    %376 = vmatpush.msra.mxu0 %v87
    %377 = vmatpush.msra.mxu0 %v84
    %378 = vmatpush.msra.mxu0 %v81
    %379 = vmatpush.msra.mxu0 %v78
    %380 = vmatpush.msra.mxu0 %v75
    %381 = vmatpush.msra.mxu0 %v72
    %382 = vmatpush.msra.mxu0 %v69
    %383 = vmatpush.msra.mxu0 %v66
    %384 = vmatpush.msra.mxu0 %v63
    %385 = vmatpush.msra.mxu0 %v60
    %386 = vmatpush.msra.mxu0 %v57
    %387 = vmatpush.msra.mxu0 %v54
    %388 = vmatmul.f32.gmra.mxu0 %v327
    %v389 = vpop.f32.mrf.mxu0
    %v390 = vadd.f32 0.0, %v389
    %391 = vdwg.mxu0
    %v392 = vadd.f32 %v329, %v350
    %v393 = vxor.u32 %v392, 2147483648
    %v394 = vmul.f32 %v393, 1.442695
    %v395 = vpow.pop %v394
    %v396 = vadd.f32 %v395, 1.0
    %v397 = vrcp.pop %v396
    %v398 = vmul.f32 %v396, %v397
    %v399 = vsub.f32 1.0, %v398
    %v400 = vmul.f32 %v397, %v399
    %v401 = vadd.f32 %v397, %v400
    %vm402 = vweird.f32 %v396
    %vm403 = vweird.f32 %v397
    %vm404 = vmor %vm402, %vm403
    %v405 = vsel %vm404, %v397, %v401
    %v406 = vand.u32 2147483647, %v396
    %vm407 = vcmp.eq.f32.partialorder %v406, 8.507059e+37
    %v408 = vand.u32 %v396, 2147483648
    %v409 = vor.u32 1.1754944e-38, %v408
    %v410 = vsel %vm407, %v409, %v405
    %v411 = vmul.f32 1.0, %v410
    %v412 = vadd.f32 %v330, %v370
    %v413 = vxor.u32 %v412, 2147483648
    %v414 = vmul.f32 %v413, 1.442695
    %v415 = vpow.pop %v414
    %v416 = vadd.f32 %v415, 1.0
    %v417 = vrcp.pop %v416
    %v418 = vmul.f32 %v416, %v417
    %v419 = vsub.f32 1.0, %v418
    %v420 = vmul.f32 %v417, %v419
    %v421 = vadd.f32 %v417, %v420
    %vm422 = vweird.f32 %v416
    %vm423 = vweird.f32 %v417
    %vm424 = vmor %vm422, %vm423
    %v425 = vsel %vm424, %v417, %v421
    %v426 = vand.u32 2147483647, %v416
    %vm427 = vcmp.eq.f32.partialorder %v426, 8.507059e+37
    %v428 = vand.u32 %v416, 2147483648
    %v429 = vor.u32 1.1754944e-38, %v428
    %v430 = vsel %vm427, %v429, %v425
    %v431 = vmul.f32 1.0, %v430
    %v432 = vadd.f32 %v390, %v102
    %v433 = vmul.f32 %v411, %v432
    %v434 = vadd.f32 %v331, %v433
    %v435 = vtanh.pop %v434
    %v436 = vsub.f32 1.0, %v431
    %v437 = vmul.f32 %v436, %v435
    %v438 = vmul.f32 %v431, %v327
    %v439 = vadd.f32 %v437, %v438
    %s440 = scalar_lea.vmem [#allocation2], 72
    %v441 = vld [vmem:[%s440] sm:$0xff]
    %v442 = vld [vmem:[%s440 + $0x8] sm:$0xff]
    %v443 = vld [vmem:[%s440 + $0x10] sm:$0xff]
    %444 = vmatpush.msra.mxu0 %v97
    %445 = vmatpush.msra.mxu0 %v94
    %446 = vmatpush.msra.mxu0 %v91
    %447 = vmatpush.msra.mxu0 %v88
    %448 = vmatpush.msra.mxu0 %v85
    %449 = vmatpush.msra.mxu0 %v82
    %450 = vmatpush.msra.mxu0 %v79
    %451 = vmatpush.msra.mxu0 %v76
    %452 = vmatpush.msra.mxu0 %v73
    %453 = vmatpush.msra.mxu0 %v70
    %454 = vmatpush.msra.mxu0 %v67
    %455 = vmatpush.msra.mxu0 %v64
    %456 = vmatpush.msra.mxu0 %v61
    %457 = vmatpush.msra.mxu0 %v58
    %458 = vmatpush.msra.mxu0 %v55
    %459 = vmatpush.msra.mxu0 %v52
    %460 = vmatmul.f32.gmra.mxu0 %v439
    %v461 = vpop.f32.mrf.mxu0
    %v462 = vadd.f32 0.0, %v461
    %463 = vdwg.mxu0
    %464 = vmatpush.msra.mxu0 %v98
    %465 = vmatpush.msra.mxu0 %v95
    %466 = vmatpush.msra.mxu0 %v92
    %467 = vmatpush.msra.mxu0 %v89
    %468 = vmatpush.msra.mxu0 %v86
    %469 = vmatpush.msra.mxu0 %v83
    %470 = vmatpush.msra.mxu0 %v80
    %471 = vmatpush.msra.mxu0 %v77
    %472 = vmatpush.msra.mxu0 %v74
    %473 = vmatpush.msra.mxu0 %v71
    %474 = vmatpush.msra.mxu0 %v68
    %475 = vmatpush.msra.mxu0 %v65
    %476 = vmatpush.msra.mxu0 %v62
    %477 = vmatpush.msra.mxu0 %v59
    %478 = vmatpush.msra.mxu0 %v56
    %479 = vmatpush.msra.mxu0 %v53
    %480 = vmatmul.f32.gmra.mxu0 %v439
    %v481 = vpop.f32.mrf.mxu0
    %v482 = vadd.f32 0.0, %v481
    %483 = vdwg.mxu0
    %484 = vmatpush.msra.mxu0 %v99
    %485 = vmatpush.msra.mxu0 %v96
    %486 = vmatpush.msra.mxu0 %v93
    %487 = vmatpush.msra.mxu0 %v90
    %488 = vmatpush.msra.mxu0 %v87
    %489 = vmatpush.msra.mxu0 %v84
    %490 = vmatpush.msra.mxu0 %v81
    %491 = vmatpush.msra.mxu0 %v78
    %492 = vmatpush.msra.mxu0 %v75
    %493 = vmatpush.msra.mxu0 %v72
    %494 = vmatpush.msra.mxu0 %v69
    %495 = vmatpush.msra.mxu0 %v66
    %496 = vmatpush.msra.mxu0 %v63
    %497 = vmatpush.msra.mxu0 %v60
    %498 = vmatpush.msra.mxu0 %v57
    %499 = vmatpush.msra.mxu0 %v54
    %500 = vmatmul.f32.gmra.mxu0 %v439
    %v501 = vpop.f32.mrf.mxu0
    %v502 = vadd.f32 0.0, %v501
    %503 = vdwg.mxu0
    %v504 = vadd.f32 %v441, %v462
    %v505 = vxor.u32 %v504, 2147483648
    %v506 = vmul.f32 %v505, 1.442695
    %v507 = vpow.pop %v506
    %v508 = vadd.f32 %v507, 1.0
    %v509 = vrcp.pop %v508
    %v510 = vmul.f32 %v508, %v509
    %v511 = vsub.f32 1.0, %v510
    %v512 = vmul.f32 %v509, %v511
    %v513 = vadd.f32 %v509, %v512
    %vm514 = vweird.f32 %v508
    %vm515 = vweird.f32 %v509
    %vm516 = vmor %vm514, %vm515
    %v517 = vsel %vm516, %v509, %v513
    %v518 = vand.u32 2147483647, %v508
    %vm519 = vcmp.eq.f32.partialorder %v518, 8.507059e+37
    %v520 = vand.u32 %v508, 2147483648
    %v521 = vor.u32 1.1754944e-38, %v520
    %v522 = vsel %vm519, %v521, %v517
    %v523 = vmul.f32 1.0, %v522
    %v524 = vadd.f32 %v442, %v482
    %v525 = vxor.u32 %v524, 2147483648
    %v526 = vmul.f32 %v525, 1.442695
    %v527 = vpow.pop %v526
    %v528 = vadd.f32 %v527, 1.0
    %v529 = vrcp.pop %v528
    %v530 = vmul.f32 %v528, %v529
    %v531 = vsub.f32 1.0, %v530
    %v532 = vmul.f32 %v529, %v531
    %v533 = vadd.f32 %v529, %v532
    %vm534 = vweird.f32 %v528
    %vm535 = vweird.f32 %v529
    %vm536 = vmor %vm534, %vm535
    %v537 = vsel %vm536, %v529, %v533
    %v538 = vand.u32 2147483647, %v528
    %vm539 = vcmp.eq.f32.partialorder %v538, 8.507059e+37
    %v540 = vand.u32 %v528, 2147483648
    %v541 = vor.u32 1.1754944e-38, %v540
    %v542 = vsel %vm539, %v541, %v537
    %v543 = vmul.f32 1.0, %v542
    %v544 = vadd.f32 %v502, %v102
    %v545 = vmul.f32 %v523, %v544
    %v546 = vadd.f32 %v443, %v545
    %v547 = vtanh.pop %v546
    %v548 = vsub.f32 1.0, %v543
    %v549 = vmul.f32 %v548, %v547
    %v550 = vmul.f32 %v543, %v439
    %v551 = vadd.f32 %v549, %v550
    %s552 = scalar_lea.vmem [#allocation2], 96
    %v553 = vld [vmem:[%s552] sm:$0xff]
    %v554 = vld [vmem:[%s552 + $0x8] sm:$0xff]
    %v555 = vld [vmem:[%s552 + $0x10] sm:$0xff]
    %556 = vmatpush.msra.mxu0 %v97
    %557 = vmatpush.msra.mxu0 %v94
    %558 = vmatpush.msra.mxu0 %v91
    %559 = vmatpush.msra.mxu0 %v88
    %560 = vmatpush.msra.mxu0 %v85
    %561 = vmatpush.msra.mxu0 %v82
    %562 = vmatpush.msra.mxu0 %v79
    %563 = vmatpush.msra.mxu0 %v76
    %564 = vmatpush.msra.mxu0 %v73
    %565 = vmatpush.msra.mxu0 %v70
    %566 = vmatpush.msra.mxu0 %v67
    %567 = vmatpush.msra.mxu0 %v64
    %568 = vmatpush.msra.mxu0 %v61
    %569 = vmatpush.msra.mxu0 %v58
    %570 = vmatpush.msra.mxu0 %v55
    %571 = vmatpush.msra.mxu0 %v52
    %572 = vmatmul.f32.gmra.mxu0 %v551
    %v573 = vpop.f32.mrf.mxu0
    %v574 = vadd.f32 0.0, %v573
    %575 = vdwg.mxu0
    %576 = vmatpush.msra.mxu0 %v98
    %577 = vmatpush.msra.mxu0 %v95
    %578 = vmatpush.msra.mxu0 %v92
    %579 = vmatpush.msra.mxu0 %v89
    %580 = vmatpush.msra.mxu0 %v86
    %581 = vmatpush.msra.mxu0 %v83
    %582 = vmatpush.msra.mxu0 %v80
    %583 = vmatpush.msra.mxu0 %v77
    %584 = vmatpush.msra.mxu0 %v74
    %585 = vmatpush.msra.mxu0 %v71
    %586 = vmatpush.msra.mxu0 %v68
    %587 = vmatpush.msra.mxu0 %v65
    %588 = vmatpush.msra.mxu0 %v62
    %589 = vmatpush.msra.mxu0 %v59
    %590 = vmatpush.msra.mxu0 %v56
    %591 = vmatpush.msra.mxu0 %v53
    %592 = vmatmul.f32.gmra.mxu0 %v551
    %v593 = vpop.f32.mrf.mxu0
    %v594 = vadd.f32 0.0, %v593
    %595 = vdwg.mxu0
    %596 = vmatpush.msra.mxu0 %v99
    %597 = vmatpush.msra.mxu0 %v96
    %598 = vmatpush.msra.mxu0 %v93
    %599 = vmatpush.msra.mxu0 %v90
    %600 = vmatpush.msra.mxu0 %v87
    %601 = vmatpush.msra.mxu0 %v84
    %602 = vmatpush.msra.mxu0 %v81
    %603 = vmatpush.msra.mxu0 %v78
    %604 = vmatpush.msra.mxu0 %v75
    %605 = vmatpush.msra.mxu0 %v72
    %606 = vmatpush.msra.mxu0 %v69
    %607 = vmatpush.msra.mxu0 %v66
    %608 = vmatpush.msra.mxu0 %v63
    %609 = vmatpush.msra.mxu0 %v60
    %610 = vmatpush.msra.mxu0 %v57
    %611 = vmatpush.msra.mxu0 %v54
    %612 = vmatmul.f32.gmra.mxu0 %v551
    %v613 = vpop.f32.mrf.mxu0
    %v614 = vadd.f32 0.0, %v613
    %615 = vdwg.mxu0
    %v616 = vadd.f32 %v553, %v574
    %v617 = vxor.u32 %v616, 2147483648
    %v618 = vmul.f32 %v617, 1.442695
    %v619 = vpow.pop %v618
    %v620 = vadd.f32 %v619, 1.0
    %v621 = vrcp.pop %v620
    %v622 = vmul.f32 %v620, %v621
    %v623 = vsub.f32 1.0, %v622
    %v624 = vmul.f32 %v621, %v623
    %v625 = vadd.f32 %v621, %v624
    %vm626 = vweird.f32 %v620
    %vm627 = vweird.f32 %v621
    %vm628 = vmor %vm626, %vm627
    %v629 = vsel %vm628, %v621, %v625
    %v630 = vand.u32 2147483647, %v620
    %vm631 = vcmp.eq.f32.partialorder %v630, 8.507059e+37
    %v632 = vand.u32 %v620, 2147483648
    %v633 = vor.u32 1.1754944e-38, %v632
    %v634 = vsel %vm631, %v633, %v629
    %v635 = vmul.f32 1.0, %v634
    %v636 = vadd.f32 %v554, %v594
    %v637 = vxor.u32 %v636, 2147483648
    %v638 = vmul.f32 %v637, 1.442695
    %v639 = vpow.pop %v638
    %v640 = vadd.f32 %v639, 1.0
    %v641 = vrcp.pop %v640
    %v642 = vmul.f32 %v640, %v641
    %v643 = vsub.f32 1.0, %v642
    %v644 = vmul.f32 %v641, %v643
    %v645 = vadd.f32 %v641, %v644
    %vm646 = vweird.f32 %v640
    %vm647 = vweird.f32 %v641
    %vm648 = vmor %vm646, %vm647
    %v649 = vsel %vm648, %v641, %v645
    %v650 = vand.u32 2147483647, %v640
    %vm651 = vcmp.eq.f32.partialorder %v650, 8.507059e+37
    %v652 = vand.u32 %v640, 2147483648
    %v653 = vor.u32 1.1754944e-38, %v652
    %v654 = vsel %vm651, %v653, %v649
    %v655 = vmul.f32 1.0, %v654
    %v656 = vadd.f32 %v614, %v102
    %v657 = vmul.f32 %v635, %v656
    %v658 = vadd.f32 %v555, %v657
    %v659 = vtanh.pop %v658
    %v660 = vsub.f32 1.0, %v655
    %v661 = vmul.f32 %v660, %v659
    %v662 = vmul.f32 %v655, %v551
    %v663 = vadd.f32 %v661, %v662
    %s664 = scalar_lea.vmem [#allocation2], 120
    %v665 = vld [vmem:[%s664] sm:$0xff]
    %v666 = vld [vmem:[%s664 + $0x8] sm:$0xff]
    %v667 = vld [vmem:[%s664 + $0x10] sm:$0xff]
    %668 = vmatpush.msra.mxu0 %v97
    %669 = vmatpush.msra.mxu0 %v94
    %670 = vmatpush.msra.mxu0 %v91
    %671 = vmatpush.msra.mxu0 %v88
    %672 = vmatpush.msra.mxu0 %v85
    %673 = vmatpush.msra.mxu0 %v82
    %674 = vmatpush.msra.mxu0 %v79
    %675 = vmatpush.msra.mxu0 %v76
    %676 = vmatpush.msra.mxu0 %v73
    %677 = vmatpush.msra.mxu0 %v70
    %678 = vmatpush.msra.mxu0 %v67
    %679 = vmatpush.msra.mxu0 %v64
    %680 = vmatpush.msra.mxu0 %v61
    %681 = vmatpush.msra.mxu0 %v58
    %682 = vmatpush.msra.mxu0 %v55
    %683 = vmatpush.msra.mxu0 %v52
    %684 = vmatmul.f32.gmra.mxu0 %v663
    %v685 = vpop.f32.mrf.mxu0
    %v686 = vadd.f32 0.0, %v685
    %687 = vdwg.mxu0
    %688 = vmatpush.msra.mxu0 %v98
    %689 = vmatpush.msra.mxu0 %v95
    %690 = vmatpush.msra.mxu0 %v92
    %691 = vmatpush.msra.mxu0 %v89
    %692 = vmatpush.msra.mxu0 %v86
    %693 = vmatpush.msra.mxu0 %v83
    %694 = vmatpush.msra.mxu0 %v80
    %695 = vmatpush.msra.mxu0 %v77
    %696 = vmatpush.msra.mxu0 %v74
    %697 = vmatpush.msra.mxu0 %v71
    %698 = vmatpush.msra.mxu0 %v68
    %699 = vmatpush.msra.mxu0 %v65
    %700 = vmatpush.msra.mxu0 %v62
    %701 = vmatpush.msra.mxu0 %v59
    %702 = vmatpush.msra.mxu0 %v56
    %703 = vmatpush.msra.mxu0 %v53
    %704 = vmatmul.f32.gmra.mxu0 %v663
    %v705 = vpop.f32.mrf.mxu0
    %v706 = vadd.f32 0.0, %v705
    %707 = vdwg.mxu0
    %708 = vmatpush.msra.mxu0 %v99
    %709 = vmatpush.msra.mxu0 %v96
    %710 = vmatpush.msra.mxu0 %v93
    %711 = vmatpush.msra.mxu0 %v90
    %712 = vmatpush.msra.mxu0 %v87
    %713 = vmatpush.msra.mxu0 %v84
    %714 = vmatpush.msra.mxu0 %v81
    %715 = vmatpush.msra.mxu0 %v78
    %716 = vmatpush.msra.mxu0 %v75
    %717 = vmatpush.msra.mxu0 %v72
    %718 = vmatpush.msra.mxu0 %v69
    %719 = vmatpush.msra.mxu0 %v66
    %720 = vmatpush.msra.mxu0 %v63
    %721 = vmatpush.msra.mxu0 %v60
    %722 = vmatpush.msra.mxu0 %v57
    %723 = vmatpush.msra.mxu0 %v54
    %724 = vmatmul.f32.gmra.mxu0 %v663
    %v725 = vpop.f32.mrf.mxu0
    %v726 = vadd.f32 0.0, %v725
    %727 = vdwg.mxu0
    %v728 = vadd.f32 %v665, %v686
    %v729 = vxor.u32 %v728, 2147483648
    %v730 = vmul.f32 %v729, 1.442695
    %v731 = vpow.pop %v730
    %v732 = vadd.f32 %v731, 1.0
    %v733 = vrcp.pop %v732
    %v734 = vmul.f32 %v732, %v733
    %v735 = vsub.f32 1.0, %v734
    %v736 = vmul.f32 %v733, %v735
    %v737 = vadd.f32 %v733, %v736
    %vm738 = vweird.f32 %v732
    %vm739 = vweird.f32 %v733
    %vm740 = vmor %vm738, %vm739
    %v741 = vsel %vm740, %v733, %v737
    %v742 = vand.u32 2147483647, %v732
    %vm743 = vcmp.eq.f32.partialorder %v742, 8.507059e+37
    %v744 = vand.u32 %v732, 2147483648
    %v745 = vor.u32 1.1754944e-38, %v744
    %v746 = vsel %vm743, %v745, %v741
    %v747 = vmul.f32 1.0, %v746
    %v748 = vadd.f32 %v666, %v706
    %v749 = vxor.u32 %v748, 2147483648
    %v750 = vmul.f32 %v749, 1.442695
    %v751 = vpow.pop %v750
    %v752 = vadd.f32 %v751, 1.0
    %v753 = vrcp.pop %v752
    %v754 = vmul.f32 %v752, %v753
    %v755 = vsub.f32 1.0, %v754
    %v756 = vmul.f32 %v753, %v755
    %v757 = vadd.f32 %v753, %v756
    %vm758 = vweird.f32 %v752
    %vm759 = vweird.f32 %v753
    %vm760 = vmor %vm758, %vm759
    %v761 = vsel %vm760, %v753, %v757
    %v762 = vand.u32 2147483647, %v752
    %vm763 = vcmp.eq.f32.partialorder %v762, 8.507059e+37
    %v764 = vand.u32 %v752, 2147483648
    %v765 = vor.u32 1.1754944e-38, %v764
    %v766 = vsel %vm763, %v765, %v761
    %v767 = vmul.f32 1.0, %v766
    %v768 = vadd.f32 %v726, %v102
    %v769 = vmul.f32 %v747, %v768
    %v770 = vadd.f32 %v667, %v769
    %v771 = vtanh.pop %v770
    %v772 = vsub.f32 1.0, %v767
    %v773 = vmul.f32 %v772, %v771
    %v774 = vmul.f32 %v767, %v663
    %v775 = vadd.f32 %v773, %v774
    %s776 = scalar_lea.vmem [#allocation2], 144
    %v777 = vld [vmem:[%s776] sm:$0xff]
    %v778 = vld [vmem:[%s776 + $0x8] sm:$0xff]
    %v779 = vld [vmem:[%s776 + $0x10] sm:$0xff]
    %780 = vmatpush.msra.mxu0 %v97
    %781 = vmatpush.msra.mxu0 %v94
    %782 = vmatpush.msra.mxu0 %v91
    %783 = vmatpush.msra.mxu0 %v88
    %784 = vmatpush.msra.mxu0 %v85
    %785 = vmatpush.msra.mxu0 %v82
    %786 = vmatpush.msra.mxu0 %v79
    %787 = vmatpush.msra.mxu0 %v76
    %788 = vmatpush.msra.mxu0 %v73
    %789 = vmatpush.msra.mxu0 %v70
    %790 = vmatpush.msra.mxu0 %v67
    %791 = vmatpush.msra.mxu0 %v64
    %792 = vmatpush.msra.mxu0 %v61
    %793 = vmatpush.msra.mxu0 %v58
    %794 = vmatpush.msra.mxu0 %v55
    %795 = vmatpush.msra.mxu0 %v52
    %796 = vmatmul.f32.gmra.mxu0 %v775
    %v797 = vpop.f32.mrf.mxu0
    %v798 = vadd.f32 0.0, %v797
    %799 = vdwg.mxu0
    %800 = vmatpush.msra.mxu0 %v98
    %801 = vmatpush.msra.mxu0 %v95
    %802 = vmatpush.msra.mxu0 %v92
    %803 = vmatpush.msra.mxu0 %v89
    %804 = vmatpush.msra.mxu0 %v86
    %805 = vmatpush.msra.mxu0 %v83
    %806 = vmatpush.msra.mxu0 %v80
    %807 = vmatpush.msra.mxu0 %v77
    %808 = vmatpush.msra.mxu0 %v74
    %809 = vmatpush.msra.mxu0 %v71
    %810 = vmatpush.msra.mxu0 %v68
    %811 = vmatpush.msra.mxu0 %v65
    %812 = vmatpush.msra.mxu0 %v62
    %813 = vmatpush.msra.mxu0 %v59
    %814 = vmatpush.msra.mxu0 %v56
    %815 = vmatpush.msra.mxu0 %v53
    %816 = vmatmul.f32.gmra.mxu0 %v775
    %v817 = vpop.f32.mrf.mxu0
    %v818 = vadd.f32 0.0, %v817
    %819 = vdwg.mxu0
    %820 = vmatpush.msra.mxu0 %v99
    %821 = vmatpush.msra.mxu0 %v96
    %822 = vmatpush.msra.mxu0 %v93
    %823 = vmatpush.msra.mxu0 %v90
    %824 = vmatpush.msra.mxu0 %v87
    %825 = vmatpush.msra.mxu0 %v84
    %826 = vmatpush.msra.mxu0 %v81
    %827 = vmatpush.msra.mxu0 %v78
    %828 = vmatpush.msra.mxu0 %v75
    %829 = vmatpush.msra.mxu0 %v72
    %830 = vmatpush.msra.mxu0 %v69
    %831 = vmatpush.msra.mxu0 %v66
    %832 = vmatpush.msra.mxu0 %v63
    %833 = vmatpush.msra.mxu0 %v60
    %834 = vmatpush.msra.mxu0 %v57
    %835 = vmatpush.msra.mxu0 %v54
    %836 = vmatmul.f32.gmra.mxu0 %v775
    %v837 = vpop.f32.mrf.mxu0
    %v838 = vadd.f32 0.0, %v837
    %839 = vdwg.mxu0
    %v840 = vadd.f32 %v777, %v798
    %v841 = vxor.u32 %v840, 2147483648
    %v842 = vmul.f32 %v841, 1.442695
    %v843 = vpow.pop %v842
    %v844 = vadd.f32 %v843, 1.0
    %v845 = vrcp.pop %v844
    %v846 = vmul.f32 %v844, %v845
    %v847 = vsub.f32 1.0, %v846
    %v848 = vmul.f32 %v845, %v847
    %v849 = vadd.f32 %v845, %v848
    %vm850 = vweird.f32 %v844
    %vm851 = vweird.f32 %v845
    %vm852 = vmor %vm850, %vm851
    %v853 = vsel %vm852, %v845, %v849
    %v854 = vand.u32 2147483647, %v844
    %vm855 = vcmp.eq.f32.partialorder %v854, 8.507059e+37
    %v856 = vand.u32 %v844, 2147483648
    %v857 = vor.u32 1.1754944e-38, %v856
    %v858 = vsel %vm855, %v857, %v853
    %v859 = vmul.f32 1.0, %v858
    %v860 = vadd.f32 %v778, %v818
    %v861 = vxor.u32 %v860, 2147483648
    %v862 = vmul.f32 %v861, 1.442695
    %v863 = vpow.pop %v862
    %v864 = vadd.f32 %v863, 1.0
    %v865 = vrcp.pop %v864
    %v866 = vmul.f32 %v864, %v865
    %v867 = vsub.f32 1.0, %v866
    %v868 = vmul.f32 %v865, %v867
    %v869 = vadd.f32 %v865, %v868
    %vm870 = vweird.f32 %v864
    %vm871 = vweird.f32 %v865
    %vm872 = vmor %vm870, %vm871
    %v873 = vsel %vm872, %v865, %v869
    %v874 = vand.u32 2147483647, %v864
    %vm875 = vcmp.eq.f32.partialorder %v874, 8.507059e+37
    %v876 = vand.u32 %v864, 2147483648
    %v877 = vor.u32 1.1754944e-38, %v876
    %v878 = vsel %vm875, %v877, %v873
    %v879 = vmul.f32 1.0, %v878
    %v880 = vadd.f32 %v838, %v102
    %v881 = vmul.f32 %v859, %v880
    %v882 = vadd.f32 %v779, %v881
    %v883 = vtanh.pop %v882
    %v884 = vsub.f32 1.0, %v879
    %v885 = vmul.f32 %v884, %v883
    %v886 = vmul.f32 %v879, %v775
    %v887 = vadd.f32 %v885, %v886
    %s888 = scalar_lea.vmem [#allocation2], 168
    %v889 = vld [vmem:[%s888] sm:$0xff]
    %v890 = vld [vmem:[%s888 + $0x8] sm:$0xff]
    %v891 = vld [vmem:[%s888 + $0x10] sm:$0xff]
    %892 = vmatpush.msra.mxu0 %v97
    %893 = vmatpush.msra.mxu0 %v94
    %894 = vmatpush.msra.mxu0 %v91
    %895 = vmatpush.msra.mxu0 %v88
    %896 = vmatpush.msra.mxu0 %v85
    %897 = vmatpush.msra.mxu0 %v82
    %898 = vmatpush.msra.mxu0 %v79
    %899 = vmatpush.msra.mxu0 %v76
    %900 = vmatpush.msra.mxu0 %v73
    %901 = vmatpush.msra.mxu0 %v70
    %902 = vmatpush.msra.mxu0 %v67
    %903 = vmatpush.msra.mxu0 %v64
    %904 = vmatpush.msra.mxu0 %v61
    %905 = vmatpush.msra.mxu0 %v58
    %906 = vmatpush.msra.mxu0 %v55
    %907 = vmatpush.msra.mxu0 %v52
    %908 = vmatmul.f32.gmra.mxu0 %v887
    %v909 = vpop.f32.mrf.mxu0
    %v910 = vadd.f32 0.0, %v909
    %911 = vdwg.mxu0
    %912 = vmatpush.msra.mxu0 %v98
    %913 = vmatpush.msra.mxu0 %v95
    %914 = vmatpush.msra.mxu0 %v92
    %915 = vmatpush.msra.mxu0 %v89
    %916 = vmatpush.msra.mxu0 %v86
    %917 = vmatpush.msra.mxu0 %v83
    %918 = vmatpush.msra.mxu0 %v80
    %919 = vmatpush.msra.mxu0 %v77
    %920 = vmatpush.msra.mxu0 %v74
    %921 = vmatpush.msra.mxu0 %v71
    %922 = vmatpush.msra.mxu0 %v68
    %923 = vmatpush.msra.mxu0 %v65
    %924 = vmatpush.msra.mxu0 %v62
    %925 = vmatpush.msra.mxu0 %v59
    %926 = vmatpush.msra.mxu0 %v56
    %927 = vmatpush.msra.mxu0 %v53
    %928 = vmatmul.f32.gmra.mxu0 %v887
    %v929 = vpop.f32.mrf.mxu0
    %v930 = vadd.f32 0.0, %v929
    %931 = vdwg.mxu0
    %932 = vmatpush.msra.mxu0 %v99
    %933 = vmatpush.msra.mxu0 %v96
    %934 = vmatpush.msra.mxu0 %v93
    %935 = vmatpush.msra.mxu0 %v90
    %936 = vmatpush.msra.mxu0 %v87
    %937 = vmatpush.msra.mxu0 %v84
    %938 = vmatpush.msra.mxu0 %v81
    %939 = vmatpush.msra.mxu0 %v78
    %940 = vmatpush.msra.mxu0 %v75
    %941 = vmatpush.msra.mxu0 %v72
    %942 = vmatpush.msra.mxu0 %v69
    %943 = vmatpush.msra.mxu0 %v66
    %944 = vmatpush.msra.mxu0 %v63
    %945 = vmatpush.msra.mxu0 %v60
    %946 = vmatpush.msra.mxu0 %v57
    %947 = vmatpush.msra.mxu0 %v54
    %948 = vmatmul.f32.gmra.mxu0 %v887
    %v949 = vpop.f32.mrf.mxu0
    %v950 = vadd.f32 0.0, %v949
    %951 = vdwg.mxu0
    %v952 = vadd.f32 %v889, %v910
    %v953 = vxor.u32 %v952, 2147483648
    %v954 = vmul.f32 %v953, 1.442695
    %v955 = vpow.pop %v954
    %v956 = vadd.f32 %v955, 1.0
    %v957 = vrcp.pop %v956
    %v958 = vmul.f32 %v956, %v957
    %v959 = vsub.f32 1.0, %v958
    %v960 = vmul.f32 %v957, %v959
    %v961 = vadd.f32 %v957, %v960
    %vm962 = vweird.f32 %v956
    %vm963 = vweird.f32 %v957
    %vm964 = vmor %vm962, %vm963
    %v965 = vsel %vm964, %v957, %v961
    %v966 = vand.u32 2147483647, %v956
    %vm967 = vcmp.eq.f32.partialorder %v966, 8.507059e+37
    %v968 = vand.u32 %v956, 2147483648
    %v969 = vor.u32 1.1754944e-38, %v968
    %v970 = vsel %vm967, %v969, %v965
    %v971 = vmul.f32 1.0, %v970
    %v972 = vadd.f32 %v890, %v930
    %v973 = vxor.u32 %v972, 2147483648
    %v974 = vmul.f32 %v973, 1.442695
    %v975 = vpow.pop %v974
    %v976 = vadd.f32 %v975, 1.0
    %v977 = vrcp.pop %v976
    %v978 = vmul.f32 %v976, %v977
    %v979 = vsub.f32 1.0, %v978
    %v980 = vmul.f32 %v977, %v979
    %v981 = vadd.f32 %v977, %v980
    %vm982 = vweird.f32 %v976
    %vm983 = vweird.f32 %v977
    %vm984 = vmor %vm982, %vm983
    %v985 = vsel %vm984, %v977, %v981
    %v986 = vand.u32 2147483647, %v976
    %vm987 = vcmp.eq.f32.partialorder %v986, 8.507059e+37
    %v988 = vand.u32 %v976, 2147483648
    %v989 = vor.u32 1.1754944e-38, %v988
    %v990 = vsel %vm987, %v989, %v985
    %v991 = vmul.f32 1.0, %v990
    %v992 = vadd.f32 %v950, %v102
    %v993 = vmul.f32 %v971, %v992
    %v994 = vadd.f32 %v891, %v993
    %v995 = vtanh.pop %v994
    %v996 = vsub.f32 1.0, %v991
    %v997 = vmul.f32 %v996, %v995
    %v998 = vmul.f32 %v991, %v887
    %v999 = vadd.f32 %v997, %v998
    %1000 = vst [vmem:[#allocation7] sm:$0xff] %v999
    // Predicated region
    $region26: #{tpu_custom_call.1} parent=1 // pred_check
      _
    $region27: #{tpu_custom_call.1} parent=1 // pred_check_branch
      %1002 = sbr.rel (0) target = $region29
    $region28: #{tpu_custom_call.1} parent=1 // pred_region
      %1004 = vsyncadd [#allocation4], 0
      %s1006 = sshll.u32 [#allocation7], 4
      %s1007 = int_to_ptr.vmem [resolvable:$true] %s1006
      %s1008 = sshll.u32 %s3, 4
      %s1009 = int_to_ptr.hbm [resolvable:$true] %s1008
      %1011 = dma.vmem_to_hbm [thread:$0]  %s1007, 128, %s1009, [#allocation4]
    $region29: #{tpu_custom_call.1} parent=1 // pred_fallthru
      _
    // Predicated region
    $region30: #{tpu_custom_call.1} parent=1 // pred_check
      _
    $region31: #{tpu_custom_call.1} parent=1 // pred_check_branch
      %1013 = sbr.rel (0) target = $region33
    $region32: #{tpu_custom_call.1} parent=1 // pred_region
      %1015 = dma.done [#allocation4], 128
    $region33: #{tpu_custom_call.1} parent=1 // pred_fallthru
      _
    %1016 = vsyncpa [#allocation3], 1
    %1017 = vsyncpa [#allocation6], 1
    %1018 = vsyncpa [#allocation4], 1

</llo_original>
